<compile_context>
chip_gen: v7x
topology: tpu7x:2x2x1
jax: 0.10.0
libtpu: 0.0.40
codegen_flags: <defaults>
</compile_context>

<pallas_src>
import functools

import jax
import jax.numpy as jnp
from jax.experimental import pallas as pl
from jax.experimental.pallas import tpu as pltpu


# ----------------------------------------------------------------------------
# Fused Pallas kernel: one grid step == one batch element, all layers in VMEM
# ----------------------------------------------------------------------------
def _stdf_kernel(xc_ref, zc_ref, vc_ref, p_ref, mprev_ref, mnext_ref,
                 th1w_ref, th1b_ref, tw1_ref, tb1_ref,
                 sw_ref, stw_ref,
                 fwg_ref, fws_ref, fwt_ref, fb_ref,
                 th2w_ref, th2b_ref, tw2_ref, tb2_ref,
                 hw_ref, hb_ref,
                 y_ref, *, Mb):
    f32 = jnp.float32
    bf16 = jnp.bfloat16

    P = p_ref[...]              # [Mb, Mb] bf16 : A^T (x) I_T  (graph-conv right-mult)
    mprev = mprev_ref[...]      # [1, Mb] f32   : 1.0 where t > 0
    mnext = mnext_ref[...]      # [1, Mb] f32   : 1.0 where t < T-1

    def mm(w_bf16, h):
        # bf16 x bf16 MXU matmul with f32 accumulation; output lane-dense [Co, Mb].
        return jnp.dot(w_bf16, h.astype(bf16), preferred_element_type=f32)

    def tconv3(h_f32, w_ref):
        # (1,3) conv along t (fastest column axis, period T), padding=1.
        # Shifted columns via lane rolls; columns that crossed a (b,n)-block
        # boundary are zeroed by the masks.
        h_prev = pltpu.roll(h_f32, shift=1, axis=1) * mprev        # value at t-1
        h_next = pltpu.roll(h_f32, shift=Mb - 1, axis=1) * mnext   # value at t+1
        acc = mm(w_ref[0], h_prev)
        acc = acc + mm(w_ref[1], h_f32)
        acc = acc + mm(w_ref[2], h_next)
        return acc

    # ---- STConvBlock 1: graph conv -> 1x1 + ReLU -> temporal(1,3) + ReLU ----
    g1 = jnp.dot(xc_ref[...], P, preferred_element_type=f32)          # [Cin, Mb]
    h1 = jnp.maximum(mm(th1w_ref[...], g1) + th1b_ref[...], 0.0)      # [32, Mb]
    h1 = jnp.maximum(tconv3(h1, tw1_ref) + tb1_ref[...], 0.0)         # [32, Mb]

    # ---- SETON: space embed (Linear, no bias) + time embed (Conv1d, no bias) ----
    s = mm(sw_ref[...], zc_ref[...])                                  # [16, Mb]
    v = vc_ref[...].astype(f32)                                       # [Ed, Mb]
    tt = tconv3(v, stw_ref)                                           # [16, Mb]

    # ---- fuse 1x1 over concat([h1, s, tt]); weight pre-split avoids the concat ----
    hf = (mm(fwg_ref[...], h1) + mm(fws_ref[...], s)
          + mm(fwt_ref[...], tt) + fb_ref[...])                       # [32, Mb]

    # ---- STConvBlock 2 ----
    g2 = jnp.dot(hf.astype(bf16), P, preferred_element_type=f32)      # [32, Mb]
    h2 = jnp.maximum(mm(th2w_ref[...], g2) + th2b_ref[...], 0.0)
    h2 = jnp.maximum(tconv3(h2, tw2_ref) + tb2_ref[...], 0.0)         # [32, Mb]

    # ---- head 1x1 (last-time slice is taken by the thin wrapper) ----
    y = mm(hw_ref[...], h2) + hb_ref[...]                             # [Co, Mb]
    y_ref[...] = y.astype(y_ref.dtype)


# ----------------------------------------------------------------------------
# Wrapper: layout prep (cheap, one-time) + single pallas_call
# ----------------------------------------------------------------------------
def stdf_forward(params, x, A, ext=None):
    B, Cin, N, T = x.shape
    if ext is None:
        ext = jnp.zeros((B, 8, N, T), x.dtype)
    Ed = ext.shape[1]
    Mb = N * T                     # per-batch lane width (must be multiple of 128)
    Co = params["head_w"].shape[0]
    f32, bf16 = jnp.float32, jnp.bfloat16
    # TODO(synk): for shapes where N*T is not a multiple of 128, pad the (n,t)
    # axis (and masks) up to the next multiple of 128 before the kernel.

    # ---- activations: channel-major [C, B*N*T], columns ordered (b, n, t) ----
    xc = jnp.transpose(x, (1, 0, 2, 3)).reshape(Cin, B * Mb).astype(bf16)
    zc = jnp.transpose(ext, (1, 0, 2, 3)).reshape(Ed, B * Mb).astype(bf16)
    # PyTorch Z.view(B*N, F, T) on contiguous [B,F,N,T] == raw row-major reshape.
    v = ext.reshape(B * N, Ed, T)
    vc = jnp.transpose(v, (1, 0, 2)).reshape(Ed, B * Mb).astype(bf16)

    # ---- graph conv as right-multiplication: P = A^T (x) I_T (per-batch block) ----
    P = jnp.kron(A.T, jnp.eye(T, dtype=A.dtype)).astype(bf16)          # [Mb, Mb]

    # ---- temporal-conv boundary masks (t is the fastest column axis) ----
    t_idx = jnp.arange(Mb) % T
    mprev = (t_idx != 0).astype(f32).reshape(1, Mb)
    mnext = (t_idx != T - 1).astype(f32).reshape(1, Mb)

    # ---- weights: bf16, temporal taps tap-major [K, Co, Ci]; biases f32 [C, 1] ----
    p1, p2, ps = params["stgcn1"], params["stgcn2"], params["seton"]
    th1w = p1["theta_w"].astype(bf16)
    th1b = p1["theta_b"].reshape(-1, 1).astype(f32)
    tw1 = jnp.transpose(p1["temp_w"], (2, 0, 1)).astype(bf16)
    tb1 = p1["temp_b"].reshape(-1, 1).astype(f32)
    sw = ps["space_w"].astype(bf16)
    stw = jnp.transpose(ps["time_w"], (2, 0, 1)).astype(bf16)
    fw = params["fuse_w"]
    fwg = fw[:, :32].astype(bf16)          # multiplies h_g   (channels 0:32)
    fws = fw[:, 32:48].astype(bf16)        # multiplies SETON space (32:48)
    fwt = fw[:, 48:64].astype(bf16)        # multiplies SETON time  (48:64)
    fb = params["fuse_b"].reshape(-1, 1).astype(f32)
    th2w = p2["theta_w"].astype(bf16)
    th2b = p2["theta_b"].reshape(-1, 1).astype(f32)
    tw2 = jnp.transpose(p2["temp_w"], (2, 0, 1)).astype(bf16)
    tb2 = p2["temp_b"].reshape(-1, 1).astype(f32)
    hw = params["head_w"].astype(bf16)
    hb = params["head_b"].reshape(-1, 1).astype(f32)

    col = lambda rows: pl.BlockSpec((rows, Mb), lambda b: (0, b))      # per-batch cols
    const2 = lambda shape: pl.BlockSpec(shape, lambda b: (0, 0))       # VMEM-resident
    const3 = lambda shape: pl.BlockSpec(shape, lambda b: (0, 0, 0))

    grid_spec = pltpu.PrefetchScalarGridSpec(
        num_scalar_prefetch=0,
        grid=(B,),
        in_specs=[
            col(Cin), col(Ed), col(Ed),                 # xc, zc, vc
            const2((Mb, Mb)),                           # P
            const2((1, Mb)), const2((1, Mb)),           # masks
            const2(th1w.shape), const2(th1b.shape),
            const3(tw1.shape), const2(tb1.shape),
            const2(sw.shape), const3(stw.shape),
            const2(fwg.shape), const2(fws.shape), const2(fwt.shape), const2(fb.shape),
            const2(th2w.shape), const2(th2b.shape),
            const3(tw2.shape), const2(tb2.shape),
            const2(hw.shape), const2(hb.shape),
        ],
        out_specs=pl.BlockSpec((Co, Mb), lambda b: (0, b)),
    )

    y_full = pl.pallas_call(
        functools.partial(_stdf_kernel, Mb=Mb),
        out_shape=jax.ShapeDtypeStruct((Co, B * Mb), jnp.float32),
        grid_spec=grid_spec,
        compiler_params=pltpu.CompilerParams(
            dimension_semantics=("parallel",)),
    )(xc, zc, vc, P, mprev, mnext,
      th1w, th1b, tw1, tb1, sw, stw, fwg, fws, fwt, fb,
      th2w, th2b, tw2, tb2, hw, hb)

    # back to [B, Co, N, 1]: keep only the last time step
    y = y_full.reshape(Co, B, N, T)[..., T - 1:]
    return jnp.transpose(y, (1, 0, 2, 3))


# ----------------------------------------------------------------------------
# Deterministic parameter init (matches the PyTorch module's layer shapes)
# ----------------------------------------------------------------------------
def init_params(key, in_channels, out_channels, ext_dim=8):
    ks = jax.random.split(key, 14)
    w = lambda k, shape, s=0.1: jax.random.normal(k, shape, jnp.float32) * s
    return {
        "stgcn1": {
            "theta_w": w(ks[0], (32, in_channels)),
            "theta_b": w(ks[1], (32,)),
            "temp_w": w(ks[2], (32, 32, 3)),
            "temp_b": w(ks[3], (32,)),
        },
        "seton": {
            "space_w": w(ks[4], (16, ext_dim)),
            "time_w": w(ks[5], (16, ext_dim, 3)),
        },
        "fuse_w": w(ks[6], (32, 64)),
        "fuse_b": w(ks[7], (32,)),
        "stgcn2": {
            "theta_w": w(ks[8], (32, 32)),
            "theta_b": w(ks[9], (32,)),
            "temp_w": w(ks[10], (32, 32, 3)),
            "temp_b": w(ks[11], (32,)),
        },
        "head_w": w(ks[12], (out_channels, 32)),
        "head_b": w(ks[13], (out_channels,)),
    }


if __name__ == "__main__":
    B, Cin, N, T = 2, 4, 16, 16
    Cout, ext_dim = 2, 8

    key = jax.random.PRNGKey(0)
    k_p, k_x, k_e, k_a = jax.random.split(key, 4)

    params = init_params(k_p, Cin, Cout, ext_dim)
    x = jax.random.normal(k_x, (B, Cin, N, T), jnp.float32)
    ext = jax.random.normal(k_e, (B, ext_dim, N, T), jnp.float32)
    A = jax.random.uniform(k_a, (N, N), jnp.float32)
    A = A / jnp.sum(A, axis=1, keepdims=True)          # row-normalized adjacency

    fwd = jax.jit(stdf_forward)
    y = fwd(params, x, A, ext)
    y = jax.block_until_ready(y)
    assert y.shape == (B, Cout, N, 1), y.shape
    print("KERNEL_OK")
</pallas_src>

<mosaic_0001>
module attributes {stable_mosaic.version = 11 : i64} {
  func.func @_stdf_kernel(%arg0: i32, %arg1: memref<4x256xbf16, #tpu.memory_space<vmem>>, %arg2: memref<8x256xbf16, #tpu.memory_space<vmem>>, %arg3: memref<8x256xbf16, #tpu.memory_space<vmem>>, %arg4: memref<256x256xbf16, #tpu.memory_space<vmem>>, %arg5: memref<1x256xf32, #tpu.memory_space<vmem>>, %arg6: memref<1x256xf32, #tpu.memory_space<vmem>>, %arg7: memref<32x4xbf16, #tpu.memory_space<vmem>>, %arg8: memref<32x1xf32, #tpu.memory_space<vmem>>, %arg9: memref<3x32x32xbf16, #tpu.memory_space<vmem>>, %arg10: memref<32x1xf32, #tpu.memory_space<vmem>>, %arg11: memref<16x8xbf16, #tpu.memory_space<vmem>>, %arg12: memref<3x16x8xbf16, #tpu.memory_space<vmem>>, %arg13: memref<32x32xbf16, #tpu.memory_space<vmem>>, %arg14: memref<32x16xbf16, #tpu.memory_space<vmem>>, %arg15: memref<32x16xbf16, #tpu.memory_space<vmem>>, %arg16: memref<32x1xf32, #tpu.memory_space<vmem>>, %arg17: memref<32x32xbf16, #tpu.memory_space<vmem>>, %arg18: memref<32x1xf32, #tpu.memory_space<vmem>>, %arg19: memref<3x32x32xbf16, #tpu.memory_space<vmem>>, %arg20: memref<32x1xf32, #tpu.memory_space<vmem>>, %arg21: memref<2x32xbf16, #tpu.memory_space<vmem>>, %arg22: memref<2x1xf32, #tpu.memory_space<vmem>>, %arg23: memref<2x256xf32, #tpu.memory_space<vmem>>) attributes {dimension_semantics = [#tpu.dimension_semantics<parallel>], iteration_bounds = array<i64: 2>, scalar_prefetch = 0 : i64, scratch_operands = 0 : i64, tpu.core_type = #tpu.core_type<tc>, window_params = [{transform_indices = @transform_0, window_bounds = array<i64: 4, 256>}, {transform_indices = @transform_1, window_bounds = array<i64: 8, 256>}, {transform_indices = @transform_2, window_bounds = array<i64: 8, 256>}, {pipeline_mode = #tpu.pipeline_mode<synchronous>, transform_indices = @transform_3, window_bounds = array<i64: 256, 256>}, {pipeline_mode = #tpu.pipeline_mode<synchronous>, transform_indices = @transform_4, window_bounds = array<i64: 1, 256>}, {pipeline_mode = #tpu.pipeline_mode<synchronous>, transform_indices = @transform_5, window_bounds = array<i64: 1, 256>}, {pipeline_mode = #tpu.pipeline_mode<synchronous>, transform_indices = @transform_6, window_bounds = array<i64: 32, 4>}, {pipeline_mode = #tpu.pipeline_mode<synchronous>, transform_indices = @transform_7, window_bounds = array<i64: 32, 1>}, {pipeline_mode = #tpu.pipeline_mode<synchronous>, transform_indices = @transform_8, window_bounds = array<i64: 3, 32, 32>}, {pipeline_mode = #tpu.pipeline_mode<synchronous>, transform_indices = @transform_9, window_bounds = array<i64: 32, 1>}, {pipeline_mode = #tpu.pipeline_mode<synchronous>, transform_indices = @transform_10, window_bounds = array<i64: 16, 8>}, {pipeline_mode = #tpu.pipeline_mode<synchronous>, transform_indices = @transform_11, window_bounds = array<i64: 3, 16, 8>}, {pipeline_mode = #tpu.pipeline_mode<synchronous>, transform_indices = @transform_12, window_bounds = array<i64: 32, 32>}, {pipeline_mode = #tpu.pipeline_mode<synchronous>, transform_indices = @transform_13, window_bounds = array<i64: 32, 16>}, {pipeline_mode = #tpu.pipeline_mode<synchronous>, transform_indices = @transform_14, window_bounds = array<i64: 32, 16>}, {pipeline_mode = #tpu.pipeline_mode<synchronous>, transform_indices = @transform_15, window_bounds = array<i64: 32, 1>}, {pipeline_mode = #tpu.pipeline_mode<synchronous>, transform_indices = @transform_16, window_bounds = array<i64: 32, 32>}, {pipeline_mode = #tpu.pipeline_mode<synchronous>, transform_indices = @transform_17, window_bounds = array<i64: 32, 1>}, {pipeline_mode = #tpu.pipeline_mode<synchronous>, transform_indices = @transform_18, window_bounds = array<i64: 3, 32, 32>}, {pipeline_mode = #tpu.pipeline_mode<synchronous>, transform_indices = @transform_19, window_bounds = array<i64: 32, 1>}, {pipeline_mode = #tpu.pipeline_mode<synchronous>, transform_indices = @transform_20, window_bounds = array<i64: 2, 32>}, {pipeline_mode = #tpu.pipeline_mode<synchronous>, transform_indices = @transform_21, window_bounds = array<i64: 2, 1>}, {transform_indices = @transform_22, window_bounds = array<i64: 2, 256>}]} {
    %c0 = arith.constant 0 : index
    %c0_0 = arith.constant 0 : index
    %0 = vector.load %arg4[%c0, %c0_0] : memref<256x256xbf16, #tpu.memory_space<vmem>>, vector<256x256xbf16>
    %c0_1 = arith.constant 0 : index
    %c0_2 = arith.constant 0 : index
    %1 = vector.load %arg5[%c0_1, %c0_2] : memref<1x256xf32, #tpu.memory_space<vmem>>, vector<1x256xf32>
    %c0_3 = arith.constant 0 : index
    %c0_4 = arith.constant 0 : index
    %2 = vector.load %arg6[%c0_3, %c0_4] : memref<1x256xf32, #tpu.memory_space<vmem>>, vector<1x256xf32>
    %c0_5 = arith.constant 0 : index
    %c0_6 = arith.constant 0 : index
    %3 = vector.load %arg1[%c0_5, %c0_6] : memref<4x256xbf16, #tpu.memory_space<vmem>>, vector<4x256xbf16>
    %cst = arith.constant dense<0.000000e+00> : vector<4x256xf32>
    %4 = tpu.matmul %3, %0, %cst {dimension_numbers = #tpu.dot_dimension_numbers<[1], [0], [0], [1], [0, 0, 1, 1], [], []>} : vector<4x256xbf16>, vector<256x256xbf16>, vector<4x256xf32> -> vector<4x256xf32>
    %c0_7 = arith.constant 0 : index
    %c0_8 = arith.constant 0 : index
    %5 = vector.load %arg7[%c0_7, %c0_8] : memref<32x4xbf16, #tpu.memory_space<vmem>>, vector<32x4xbf16>
    %6 = arith.truncf %4 : vector<4x256xf32> to vector<4x256xbf16>
    %cst_9 = arith.constant dense<0.000000e+00> : vector<32x256xf32>
    %7 = tpu.matmul %5, %6, %cst_9 {dimension_numbers = #tpu.dot_dimension_numbers<[1], [0], [0], [1], [0, 0, 1, 1], [], []>} : vector<32x4xbf16>, vector<4x256xbf16>, vector<32x256xf32> -> vector<32x256xf32>
    %c0_10 = arith.constant 0 : index
    %c0_11 = arith.constant 0 : index
    %8 = vector.load %arg8[%c0_10, %c0_11] : memref<32x1xf32, #tpu.memory_space<vmem>>, vector<32x1xf32>
    %9 = vector.broadcast %8 : vector<32x1xf32> to vector<32x256xf32>
    %10 = arith.addf %7, %9 : vector<32x256xf32>
    %cst_12 = arith.constant 0.000000e+00 : f32
    %11 = vector.broadcast %cst_12 : f32 to vector<32x256xf32>
    %12 = arith.maximumf %10, %11 : vector<32x256xf32>
    %c1_i32 = arith.constant 1 : i32
    %13 = tpu.dynamic_rotate %12 by %c1_i32 dim 1 : vector<32x256xf32>, i32 -> vector<32x256xf32>
    %14 = vector.broadcast %1 : vector<1x256xf32> to vector<32x256xf32>
    %15 = arith.mulf %13, %14 : vector<32x256xf32>
    %c255_i32 = arith.constant 255 : i32
    %16 = tpu.dynamic_rotate %12 by %c255_i32 dim 1 : vector<32x256xf32>, i32 -> vector<32x256xf32>
    %17 = vector.broadcast %2 : vector<1x256xf32> to vector<32x256xf32>
    %18 = arith.mulf %16, %17 : vector<32x256xf32>
    %c0_13 = arith.constant 0 : index
    %c0_14 = arith.constant 0 : index
    %c0_15 = arith.constant 0 : index
    %19 = vector.load %arg9[%c0_13, %c0_14, %c0_15] : memref<3x32x32xbf16, #tpu.memory_space<vmem>>, vector<1x32x32xbf16>
    %20 = vector.shape_cast %19 : vector<1x32x32xbf16> to vector<32x32xbf16>
    %21 = arith.truncf %15 : vector<32x256xf32> to vector<32x256xbf16>
    %cst_16 = arith.constant dense<0.000000e+00> : vector<32x256xf32>
    %22 = tpu.matmul %20, %21, %cst_16 {dimension_numbers = #tpu.dot_dimension_numbers<[1], [0], [0], [1], [0, 0, 1, 1], [], []>} : vector<32x32xbf16>, vector<32x256xbf16>, vector<32x256xf32> -> vector<32x256xf32>
    %c1 = arith.constant 1 : index
    %c0_17 = arith.constant 0 : index
    %c0_18 = arith.constant 0 : index
    %23 = vector.load %arg9[%c1, %c0_17, %c0_18] : memref<3x32x32xbf16, #tpu.memory_space<vmem>>, vector<1x32x32xbf16>
    %24 = vector.shape_cast %23 : vector<1x32x32xbf16> to vector<32x32xbf16>
    %25 = arith.truncf %12 : vector<32x256xf32> to vector<32x256xbf16>
    %cst_19 = arith.constant dense<0.000000e+00> : vector<32x256xf32>
    %26 = tpu.matmul %24, %25, %cst_19 {dimension_numbers = #tpu.dot_dimension_numbers<[1], [0], [0], [1], [0, 0, 1, 1], [], []>} : vector<32x32xbf16>, vector<32x256xbf16>, vector<32x256xf32> -> vector<32x256xf32>
    %27 = arith.addf %22, %26 : vector<32x256xf32>
    %c2 = arith.constant 2 : index
    %c0_20 = arith.constant 0 : index
    %c0_21 = arith.constant 0 : index
    %28 = vector.load %arg9[%c2, %c0_20, %c0_21] : memref<3x32x32xbf16, #tpu.memory_space<vmem>>, vector<1x32x32xbf16>
    %29 = vector.shape_cast %28 : vector<1x32x32xbf16> to vector<32x32xbf16>
    %30 = arith.truncf %18 : vector<32x256xf32> to vector<32x256xbf16>
    %cst_22 = arith.constant dense<0.000000e+00> : vector<32x256xf32>
    %31 = tpu.matmul %29, %30, %cst_22 {dimension_numbers = #tpu.dot_dimension_numbers<[1], [0], [0], [1], [0, 0, 1, 1], [], []>} : vector<32x32xbf16>, vector<32x256xbf16>, vector<32x256xf32> -> vector<32x256xf32>
    %32 = arith.addf %27, %31 : vector<32x256xf32>
    %c0_23 = arith.constant 0 : index
    %c0_24 = arith.constant 0 : index
    %33 = vector.load %arg10[%c0_23, %c0_24] : memref<32x1xf32, #tpu.memory_space<vmem>>, vector<32x1xf32>
    %34 = vector.broadcast %33 : vector<32x1xf32> to vector<32x256xf32>
    %35 = arith.addf %32, %34 : vector<32x256xf32>
    %cst_25 = arith.constant 0.000000e+00 : f32
    %36 = vector.broadcast %cst_25 : f32 to vector<32x256xf32>
    %37 = arith.maximumf %35, %36 : vector<32x256xf32>
    %c0_26 = arith.constant 0 : index
    %c0_27 = arith.constant 0 : index
    %38 = vector.load %arg11[%c0_26, %c0_27] : memref<16x8xbf16, #tpu.memory_space<vmem>>, vector<16x8xbf16>
    %c0_28 = arith.constant 0 : index
    %c0_29 = arith.constant 0 : index
    %39 = vector.load %arg2[%c0_28, %c0_29] : memref<8x256xbf16, #tpu.memory_space<vmem>>, vector<8x256xbf16>
    %cst_30 = arith.constant dense<0.000000e+00> : vector<16x256xf32>
    %40 = tpu.matmul %38, %39, %cst_30 {dimension_numbers = #tpu.dot_dimension_numbers<[1], [0], [0], [1], [0, 0, 1, 1], [], []>} : vector<16x8xbf16>, vector<8x256xbf16>, vector<16x256xf32> -> vector<16x256xf32>
    %c0_31 = arith.constant 0 : index
    %c0_32 = arith.constant 0 : index
    %41 = vector.load %arg3[%c0_31, %c0_32] : memref<8x256xbf16, #tpu.memory_space<vmem>>, vector<8x256xbf16>
    %42 = arith.extf %41 : vector<8x256xbf16> to vector<8x256xf32>
    %c1_i32_33 = arith.constant 1 : i32
    %43 = tpu.dynamic_rotate %42 by %c1_i32_33 dim 1 : vector<8x256xf32>, i32 -> vector<8x256xf32>
    %44 = vector.broadcast %1 : vector<1x256xf32> to vector<8x256xf32>
    %45 = arith.mulf %43, %44 : vector<8x256xf32>
    %c255_i32_34 = arith.constant 255 : i32
    %46 = tpu.dynamic_rotate %42 by %c255_i32_34 dim 1 : vector<8x256xf32>, i32 -> vector<8x256xf32>
    %47 = vector.broadcast %2 : vector<1x256xf32> to vector<8x256xf32>
    %48 = arith.mulf %46, %47 : vector<8x256xf32>
    %c0_35 = arith.constant 0 : index
    %c0_36 = arith.constant 0 : index
    %c0_37 = arith.constant 0 : index
    %49 = vector.load %arg12[%c0_35, %c0_36, %c0_37] : memref<3x16x8xbf16, #tpu.memory_space<vmem>>, vector<1x16x8xbf16>
    %50 = vector.shape_cast %49 : vector<1x16x8xbf16> to vector<16x8xbf16>
    %51 = arith.truncf %45 : vector<8x256xf32> to vector<8x256xbf16>
    %cst_38 = arith.constant dense<0.000000e+00> : vector<16x256xf32>
    %52 = tpu.matmul %50, %51, %cst_38 {dimension_numbers = #tpu.dot_dimension_numbers<[1], [0], [0], [1], [0, 0, 1, 1], [], []>} : vector<16x8xbf16>, vector<8x256xbf16>, vector<16x256xf32> -> vector<16x256xf32>
    %c1_39 = arith.constant 1 : index
    %c0_40 = arith.constant 0 : index
    %c0_41 = arith.constant 0 : index
    %53 = vector.load %arg12[%c1_39, %c0_40, %c0_41] : memref<3x16x8xbf16, #tpu.memory_space<vmem>>, vector<1x16x8xbf16>
    %54 = vector.shape_cast %53 : vector<1x16x8xbf16> to vector<16x8xbf16>
    %55 = arith.truncf %42 : vector<8x256xf32> to vector<8x256xbf16>
    %cst_42 = arith.constant dense<0.000000e+00> : vector<16x256xf32>
    %56 = tpu.matmul %54, %55, %cst_42 {dimension_numbers = #tpu.dot_dimension_numbers<[1], [0], [0], [1], [0, 0, 1, 1], [], []>} : vector<16x8xbf16>, vector<8x256xbf16>, vector<16x256xf32> -> vector<16x256xf32>
    %57 = arith.addf %52, %56 : vector<16x256xf32>
    %c2_43 = arith.constant 2 : index
    %c0_44 = arith.constant 0 : index
    %c0_45 = arith.constant 0 : index
    %58 = vector.load %arg12[%c2_43, %c0_44, %c0_45] : memref<3x16x8xbf16, #tpu.memory_space<vmem>>, vector<1x16x8xbf16>
    %59 = vector.shape_cast %58 : vector<1x16x8xbf16> to vector<16x8xbf16>
    %60 = arith.truncf %48 : vector<8x256xf32> to vector<8x256xbf16>
    %cst_46 = arith.constant dense<0.000000e+00> : vector<16x256xf32>
    %61 = tpu.matmul %59, %60, %cst_46 {dimension_numbers = #tpu.dot_dimension_numbers<[1], [0], [0], [1], [0, 0, 1, 1], [], []>} : vector<16x8xbf16>, vector<8x256xbf16>, vector<16x256xf32> -> vector<16x256xf32>
    %62 = arith.addf %57, %61 : vector<16x256xf32>
    %c0_47 = arith.constant 0 : index
    %c0_48 = arith.constant 0 : index
    %63 = vector.load %arg13[%c0_47, %c0_48] : memref<32x32xbf16, #tpu.memory_space<vmem>>, vector<32x32xbf16>
    %64 = arith.truncf %37 : vector<32x256xf32> to vector<32x256xbf16>
    %cst_49 = arith.constant dense<0.000000e+00> : vector<32x256xf32>
    %65 = tpu.matmul %63, %64, %cst_49 {dimension_numbers = #tpu.dot_dimension_numbers<[1], [0], [0], [1], [0, 0, 1, 1], [], []>} : vector<32x32xbf16>, vector<32x256xbf16>, vector<32x256xf32> -> vector<32x256xf32>
    %c0_50 = arith.constant 0 : index
    %c0_51 = arith.constant 0 : index
    %66 = vector.load %arg14[%c0_50, %c0_51] : memref<32x16xbf16, #tpu.memory_space<vmem>>, vector<32x16xbf16>
    %67 = arith.truncf %40 : vector<16x256xf32> to vector<16x256xbf16>
    %cst_52 = arith.constant dense<0.000000e+00> : vector<32x256xf32>
    %68 = tpu.matmul %66, %67, %cst_52 {dimension_numbers = #tpu.dot_dimension_numbers<[1], [0], [0], [1], [0, 0, 1, 1], [], []>} : vector<32x16xbf16>, vector<16x256xbf16>, vector<32x256xf32> -> vector<32x256xf32>
    %69 = arith.addf %65, %68 : vector<32x256xf32>
    %c0_53 = arith.constant 0 : index
    %c0_54 = arith.constant 0 : index
    %70 = vector.load %arg15[%c0_53, %c0_54] : memref<32x16xbf16, #tpu.memory_space<vmem>>, vector<32x16xbf16>
    %71 = arith.truncf %62 : vector<16x256xf32> to vector<16x256xbf16>
    %cst_55 = arith.constant dense<0.000000e+00> : vector<32x256xf32>
    %72 = tpu.matmul %70, %71, %cst_55 {dimension_numbers = #tpu.dot_dimension_numbers<[1], [0], [0], [1], [0, 0, 1, 1], [], []>} : vector<32x16xbf16>, vector<16x256xbf16>, vector<32x256xf32> -> vector<32x256xf32>
    %73 = arith.addf %69, %72 : vector<32x256xf32>
    %c0_56 = arith.constant 0 : index
    %c0_57 = arith.constant 0 : index
    %74 = vector.load %arg16[%c0_56, %c0_57] : memref<32x1xf32, #tpu.memory_space<vmem>>, vector<32x1xf32>
    %75 = vector.broadcast %74 : vector<32x1xf32> to vector<32x256xf32>
    %76 = arith.addf %73, %75 : vector<32x256xf32>
    %77 = arith.truncf %76 : vector<32x256xf32> to vector<32x256xbf16>
    %cst_58 = arith.constant dense<0.000000e+00> : vector<32x256xf32>
    %78 = tpu.matmul %77, %0, %cst_58 {dimension_numbers = #tpu.dot_dimension_numbers<[1], [0], [0], [1], [0, 0, 1, 1], [], []>} : vector<32x256xbf16>, vector<256x256xbf16>, vector<32x256xf32> -> vector<32x256xf32>
    %c0_59 = arith.constant 0 : index
    %c0_60 = arith.constant 0 : index
    %79 = vector.load %arg17[%c0_59, %c0_60] : memref<32x32xbf16, #tpu.memory_space<vmem>>, vector<32x32xbf16>
    %80 = arith.truncf %78 : vector<32x256xf32> to vector<32x256xbf16>
    %cst_61 = arith.constant dense<0.000000e+00> : vector<32x256xf32>
    %81 = tpu.matmul %79, %80, %cst_61 {dimension_numbers = #tpu.dot_dimension_numbers<[1], [0], [0], [1], [0, 0, 1, 1], [], []>} : vector<32x32xbf16>, vector<32x256xbf16>, vector<32x256xf32> -> vector<32x256xf32>
    %c0_62 = arith.constant 0 : index
    %c0_63 = arith.constant 0 : index
    %82 = vector.load %arg18[%c0_62, %c0_63] : memref<32x1xf32, #tpu.memory_space<vmem>>, vector<32x1xf32>
    %83 = vector.broadcast %82 : vector<32x1xf32> to vector<32x256xf32>
    %84 = arith.addf %81, %83 : vector<32x256xf32>
    %cst_64 = arith.constant 0.000000e+00 : f32
    %85 = vector.broadcast %cst_64 : f32 to vector<32x256xf32>
    %86 = arith.maximumf %84, %85 : vector<32x256xf32>
    %c1_i32_65 = arith.constant 1 : i32
    %87 = tpu.dynamic_rotate %86 by %c1_i32_65 dim 1 : vector<32x256xf32>, i32 -> vector<32x256xf32>
    %88 = vector.broadcast %1 : vector<1x256xf32> to vector<32x256xf32>
    %89 = arith.mulf %87, %88 : vector<32x256xf32>
    %c255_i32_66 = arith.constant 255 : i32
    %90 = tpu.dynamic_rotate %86 by %c255_i32_66 dim 1 : vector<32x256xf32>, i32 -> vector<32x256xf32>
    %91 = vector.broadcast %2 : vector<1x256xf32> to vector<32x256xf32>
    %92 = arith.mulf %90, %91 : vector<32x256xf32>
    %c0_67 = arith.constant 0 : index
    %c0_68 = arith.constant 0 : index
    %c0_69 = arith.constant 0 : index
    %93 = vector.load %arg19[%c0_67, %c0_68, %c0_69] : memref<3x32x32xbf16, #tpu.memory_space<vmem>>, vector<1x32x32xbf16>
    %94 = vector.shape_cast %93 : vector<1x32x32xbf16> to vector<32x32xbf16>
    %95 = arith.truncf %89 : vector<32x256xf32> to vector<32x256xbf16>
    %cst_70 = arith.constant dense<0.000000e+00> : vector<32x256xf32>
    %96 = tpu.matmul %94, %95, %cst_70 {dimension_numbers = #tpu.dot_dimension_numbers<[1], [0], [0], [1], [0, 0, 1, 1], [], []>} : vector<32x32xbf16>, vector<32x256xbf16>, vector<32x256xf32> -> vector<32x256xf32>
    %c1_71 = arith.constant 1 : index
    %c0_72 = arith.constant 0 : index
    %c0_73 = arith.constant 0 : index
    %97 = vector.load %arg19[%c1_71, %c0_72, %c0_73] : memref<3x32x32xbf16, #tpu.memory_space<vmem>>, vector<1x32x32xbf16>
    %98 = vector.shape_cast %97 : vector<1x32x32xbf16> to vector<32x32xbf16>
    %99 = arith.truncf %86 : vector<32x256xf32> to vector<32x256xbf16>
    %cst_74 = arith.constant dense<0.000000e+00> : vector<32x256xf32>
    %100 = tpu.matmul %98, %99, %cst_74 {dimension_numbers = #tpu.dot_dimension_numbers<[1], [0], [0], [1], [0, 0, 1, 1], [], []>} : vector<32x32xbf16>, vector<32x256xbf16>, vector<32x256xf32> -> vector<32x256xf32>
    %101 = arith.addf %96, %100 : vector<32x256xf32>
    %c2_75 = arith.constant 2 : index
    %c0_76 = arith.constant 0 : index
    %c0_77 = arith.constant 0 : index
    %102 = vector.load %arg19[%c2_75, %c0_76, %c0_77] : memref<3x32x32xbf16, #tpu.memory_space<vmem>>, vector<1x32x32xbf16>
    %103 = vector.shape_cast %102 : vector<1x32x32xbf16> to vector<32x32xbf16>
    %104 = arith.truncf %92 : vector<32x256xf32> to vector<32x256xbf16>
    %cst_78 = arith.constant dense<0.000000e+00> : vector<32x256xf32>
    %105 = tpu.matmul %103, %104, %cst_78 {dimension_numbers = #tpu.dot_dimension_numbers<[1], [0], [0], [1], [0, 0, 1, 1], [], []>} : vector<32x32xbf16>, vector<32x256xbf16>, vector<32x256xf32> -> vector<32x256xf32>
    %106 = arith.addf %101, %105 : vector<32x256xf32>
    %c0_79 = arith.constant 0 : index
    %c0_80 = arith.constant 0 : index
    %107 = vector.load %arg20[%c0_79, %c0_80] : memref<32x1xf32, #tpu.memory_space<vmem>>, vector<32x1xf32>
    %108 = vector.broadcast %107 : vector<32x1xf32> to vector<32x256xf32>
    %109 = arith.addf %106, %108 : vector<32x256xf32>
    %cst_81 = arith.constant 0.000000e+00 : f32
    %110 = vector.broadcast %cst_81 : f32 to vector<32x256xf32>
    %111 = arith.maximumf %109, %110 : vector<32x256xf32>
    %c0_82 = arith.constant 0 : index
    %c0_83 = arith.constant 0 : index
    %112 = vector.load %arg21[%c0_82, %c0_83] : memref<2x32xbf16, #tpu.memory_space<vmem>>, vector<2x32xbf16>
    %113 = arith.truncf %111 : vector<32x256xf32> to vector<32x256xbf16>
    %cst_84 = arith.constant dense<0.000000e+00> : vector<2x256xf32>
    %114 = tpu.matmul %112, %113, %cst_84 {dimension_numbers = #tpu.dot_dimension_numbers<[1], [0], [0], [1], [0, 0, 1, 1], [], []>} : vector<2x32xbf16>, vector<32x256xbf16>, vector<2x256xf32> -> vector<2x256xf32>
    %c0_85 = arith.constant 0 : index
    %c0_86 = arith.constant 0 : index
    %115 = vector.load %arg22[%c0_85, %c0_86] : memref<2x1xf32, #tpu.memory_space<vmem>>, vector<2x1xf32>
    %116 = vector.broadcast %115 : vector<2x1xf32> to vector<2x256xf32>
    %117 = arith.addf %114, %116 : vector<2x256xf32>
    %c0_87 = arith.constant 0 : index
    %c0_88 = arith.constant 0 : index
    %118 = vector.load %arg23[%c0_87, %c0_88] : memref<2x256xf32, #tpu.memory_space<vmem>>, vector<2x256xf32>
    tpu.vector_store %arg23[%c0_87, %c0_88], %117 {strides = array<i32>} : memref<2x256xf32, #tpu.memory_space<vmem>>, vector<2x256xf32>,
    return
  }
  func.func @transform_0(%arg0: i32) -> (i32, i32) {
    %c0_i32 = arith.constant 0 : i32
    %c0_i32_0 = arith.constant 0 : i32
    return %c0_i32, %arg0 : i32, i32
  }
  func.func @transform_1(%arg0: i32) -> (i32, i32) {
    %c0_i32 = arith.constant 0 : i32
    %c0_i32_0 = arith.constant 0 : i32
    return %c0_i32, %arg0 : i32, i32
  }
  func.func @transform_2(%arg0: i32) -> (i32, i32) {
    %c0_i32 = arith.constant 0 : i32
    %c0_i32_0 = arith.constant 0 : i32
    return %c0_i32, %arg0 : i32, i32
  }
  func.func @transform_3(%arg0: i32) -> (i32, i32) {
    %c0_i32 = arith.constant 0 : i32
    %c0_i32_0 = arith.constant 0 : i32
    %c0_i32_1 = arith.constant 0 : i32
    return %c0_i32, %c0_i32_0 : i32, i32
  }
  func.func @transform_4(%arg0: i32) -> (i32, i32) {
    %c0_i32 = arith.constant 0 : i32
    %c0_i32_0 = arith.constant 0 : i32
    %c0_i32_1 = arith.constant 0 : i32
    return %c0_i32, %c0_i32_0 : i32, i32
  }
  func.func @transform_5(%arg0: i32) -> (i32, i32) {
    %c0_i32 = arith.constant 0 : i32
    %c0_i32_0 = arith.constant 0 : i32
    %c0_i32_1 = arith.constant 0 : i32
    return %c0_i32, %c0_i32_0 : i32, i32
  }
  func.func @transform_6(%arg0: i32) -> (i32, i32) {
    %c0_i32 = arith.constant 0 : i32
    %c0_i32_0 = arith.constant 0 : i32
    %c0_i32_1 = arith.constant 0 : i32
    return %c0_i32, %c0_i32_0 : i32, i32
  }
  func.func @transform_7(%arg0: i32) -> (i32, i32) {
    %c0_i32 = arith.constant 0 : i32
    %c0_i32_0 = arith.constant 0 : i32
    %c0_i32_1 = arith.constant 0 : i32
    return %c0_i32, %c0_i32_0 : i32, i32
  }
  func.func @transform_8(%arg0: i32) -> (i32, i32, i32) {
    %c0_i32 = arith.constant 0 : i32
    %c0_i32_0 = arith.constant 0 : i32
    %c0_i32_1 = arith.constant 0 : i32
    %c0_i32_2 = arith.constant 0 : i32
    return %c0_i32, %c0_i32_0, %c0_i32_1 : i32, i32, i32
  }
  func.func @transform_9(%arg0: i32) -> (i32, i32) {
    %c0_i32 = arith.constant 0 : i32
    %c0_i32_0 = arith.constant 0 : i32
    %c0_i32_1 = arith.constant 0 : i32
    return %c0_i32, %c0_i32_0 : i32, i32
  }
  func.func @transform_10(%arg0: i32) -> (i32, i32) {
    %c0_i32 = arith.constant 0 : i32
    %c0_i32_0 = arith.constant 0 : i32
    %c0_i32_1 = arith.constant 0 : i32
    return %c0_i32, %c0_i32_0 : i32, i32
  }
  func.func @transform_11(%arg0: i32) -> (i32, i32, i32) {
    %c0_i32 = arith.constant 0 : i32
    %c0_i32_0 = arith.constant 0 : i32
    %c0_i32_1 = arith.constant 0 : i32
    %c0_i32_2 = arith.constant 0 : i32
    return %c0_i32, %c0_i32_0, %c0_i32_1 : i32, i32, i32
  }
  func.func @transform_12(%arg0: i32) -> (i32, i32) {
    %c0_i32 = arith.constant 0 : i32
    %c0_i32_0 = arith.constant 0 : i32
    %c0_i32_1 = arith.constant 0 : i32
    return %c0_i32, %c0_i32_0 : i32, i32
  }
  func.func @transform_13(%arg0: i32) -> (i32, i32) {
    %c0_i32 = arith.constant 0 : i32
    %c0_i32_0 = arith.constant 0 : i32
    %c0_i32_1 = arith.constant 0 : i32
    return %c0_i32, %c0_i32_0 : i32, i32
  }
  func.func @transform_14(%arg0: i32) -> (i32, i32) {
    %c0_i32 = arith.constant 0 : i32
    %c0_i32_0 = arith.constant 0 : i32
    %c0_i32_1 = arith.constant 0 : i32
    return %c0_i32, %c0_i32_0 : i32, i32
  }
  func.func @transform_15(%arg0: i32) -> (i32, i32) {
    %c0_i32 = arith.constant 0 : i32
    %c0_i32_0 = arith.constant 0 : i32
    %c0_i32_1 = arith.constant 0 : i32
    return %c0_i32, %c0_i32_0 : i32, i32
  }
  func.func @transform_16(%arg0: i32) -> (i32, i32) {
    %c0_i32 = arith.constant 0 : i32
    %c0_i32_0 = arith.constant 0 : i32
    %c0_i32_1 = arith.constant 0 : i32
    return %c0_i32, %c0_i32_0 : i32, i32
  }
  func.func @transform_17(%arg0: i32) -> (i32, i32) {
    %c0_i32 = arith.constant 0 : i32
    %c0_i32_0 = arith.constant 0 : i32
    %c0_i32_1 = arith.constant 0 : i32
    return %c0_i32, %c0_i32_0 : i32, i32
  }
  func.func @transform_18(%arg0: i32) -> (i32, i32, i32) {
    %c0_i32 = arith.constant 0 : i32
    %c0_i32_0 = arith.constant 0 : i32
    %c0_i32_1 = arith.constant 0 : i32
    %c0_i32_2 = arith.constant 0 : i32
    return %c0_i32, %c0_i32_0, %c0_i32_1 : i32, i32, i32
  }
  func.func @transform_19(%arg0: i32) -> (i32, i32) {
    %c0_i32 = arith.constant 0 : i32
    %c0_i32_0 = arith.constant 0 : i32
    %c0_i32_1 = arith.constant 0 : i32
    return %c0_i32, %c0_i32_0 : i32, i32
  }
  func.func @transform_20(%arg0: i32) -> (i32, i32) {
    %c0_i32 = arith.constant 0 : i32
    %c0_i32_0 = arith.constant 0 : i32
    %c0_i32_1 = arith.constant 0 : i32
    return %c0_i32, %c0_i32_0 : i32, i32
  }
  func.func @transform_21(%arg0: i32) -> (i32, i32) {
    %c0_i32 = arith.constant 0 : i32
    %c0_i32_0 = arith.constant 0 : i32
    %c0_i32_1 = arith.constant 0 : i32
    return %c0_i32, %c0_i32_0 : i32, i32
  }
  func.func @transform_22(%arg0: i32) -> (i32, i32) {
    %c0_i32 = arith.constant 0 : i32
    %c0_i32_0 = arith.constant 0 : i32
    return %c0_i32, %arg0 : i32, i32
  }
}

</mosaic_0001>

<llo_original>
// kernel: stdf_forward.1
$region0: #{stdf_forward.1}
  #allocation0 [shape = 'u32[]', space=smem, size = 0x4, offset = 0x4, fixed_abs, tag = 'smem constant byte address 0x4 - core index']
  #allocation1 [shape = 'u32[144,128]{1,0:T(1,128)}', space=vmem, size = 0x12000, scoped, tag = 'internal scratch']
  %s0 = inlined_call_operand.vmem [shape: bf16[4,512], index: 0, kind: input, shape index: {}]
  %s1 = inlined_call_operand.vmem [shape: bf16[8,512], index: 1, kind: input, shape index: {}]
  %s2 = inlined_call_operand.vmem [shape: bf16[8,512], index: 2, kind: input, shape index: {}]
  %s3 = inlined_call_operand.vmem [shape: bf16[256,256], index: 3, kind: input, shape index: {}]
  %s4 = inlined_call_operand.vmem [shape: f32[1,256], index: 4, kind: input, shape index: {}]
  %s5 = inlined_call_operand.vmem [shape: f32[1,256], index: 5, kind: input, shape index: {}]
  %s6 = inlined_call_operand.vmem [shape: bf16[32,4], index: 6, kind: input, shape index: {}]
  %s7 = inlined_call_operand.vmem [shape: f32[32,1], index: 7, kind: input, shape index: {}]
  %s8 = inlined_call_operand.vmem [shape: bf16[3,32,32], index: 8, kind: input, shape index: {}]
  %s9 = inlined_call_operand.vmem [shape: f32[32,1], index: 9, kind: input, shape index: {}]
  %s10 = inlined_call_operand.vmem [shape: bf16[16,8], index: 10, kind: input, shape index: {}]
  %s11 = inlined_call_operand.vmem [shape: bf16[3,16,8], index: 11, kind: input, shape index: {}]
  %s12 = inlined_call_operand.vmem [shape: bf16[32,32], index: 12, kind: input, shape index: {}]
  %s13 = inlined_call_operand.vmem [shape: bf16[32,16], index: 13, kind: input, shape index: {}]
  %s14 = inlined_call_operand.vmem [shape: bf16[32,16], index: 14, kind: input, shape index: {}]
  %s15 = inlined_call_operand.vmem [shape: f32[32,1], index: 15, kind: input, shape index: {}]
  %s16 = inlined_call_operand.vmem [shape: bf16[32,32], index: 16, kind: input, shape index: {}]
  %s17 = inlined_call_operand.vmem [shape: f32[32,1], index: 17, kind: input, shape index: {}]
  %s18 = inlined_call_operand.vmem [shape: bf16[3,32,32], index: 18, kind: input, shape index: {}]
  %s19 = inlined_call_operand.vmem [shape: f32[32,1], index: 19, kind: input, shape index: {}]
  %s20 = inlined_call_operand.vmem [shape: bf16[2,32], index: 20, kind: input, shape index: {}]
  %s21 = inlined_call_operand.vmem [shape: f32[2,1], index: 21, kind: input, shape index: {}]
  %s22 = inlined_call_operand.vmem [shape: f32[2,512], index: 22, kind: output, shape index: {}]
  %s23 = sld [smem:[#allocation0]]
  $region121: #{stdf_forward.1} parent=0
    _
  %s25 = ssub.s32 1, %s23
  %s26 = scalar_select 0, %s25, %s23
  loop: start=0, step=1, limit=4
  $region2: #{stdf_forward.1} parent=0 // loop_pre_header
    _
  $region3: #{stdf_forward.1} parent=0 // loop_header
    %s28 = sphi 0, %s32
    %p29 = scmp.ge.s32.totalorder %s28, 4
    %s38 = sphi 0, %s40
    %s41 = sphi 0, %s38
    %s42 = sphi 0, %s41
    %s58 = sphi 0, %s42
    %s64 = sphi 0, %s66
    %s67 = sphi 0, %s64
    %s68 = sphi 0, %s67
    %s84 = sphi 0, %s68
    %s90 = sphi 0, %s92
    %s93 = sphi 0, %s90
    %s94 = sphi 0, %s93
    %s110 = sphi 0, %s94
    %s114 = sphi 0, %s114
    %s116 = sphi 0, %s114
    %s117 = sphi 0, %s116
    %s131 = sphi 0, %s117
    %s135 = sphi 0, %s135
    %s137 = sphi 0, %s135
    %s138 = sphi 0, %s137
    %s152 = sphi 0, %s138
    %s156 = sphi 0, %s156
    %s158 = sphi 0, %s156
    %s159 = sphi 0, %s158
    %s173 = sphi 0, %s159
    %s177 = sphi 0, %s177
    %s179 = sphi 0, %s177
    %s180 = sphi 0, %s179
    %s194 = sphi 0, %s180
    %s198 = sphi 0, %s198
    %s200 = sphi 0, %s198
    %s201 = sphi 0, %s200
    %s215 = sphi 0, %s201
    %s219 = sphi 0, %s219
    %s221 = sphi 0, %s219
    %s222 = sphi 0, %s221
    %s236 = sphi 0, %s222
    %s240 = sphi 0, %s240
    %s242 = sphi 0, %s240
    %s243 = sphi 0, %s242
    %s257 = sphi 0, %s243
    %s261 = sphi 0, %s261
    %s263 = sphi 0, %s261
    %s264 = sphi 0, %s263
    %s278 = sphi 0, %s264
    %s282 = sphi 0, %s282
    %s284 = sphi 0, %s282
    %s285 = sphi 0, %s284
    %s299 = sphi 0, %s285
    %s303 = sphi 0, %s303
    %s305 = sphi 0, %s303
    %s306 = sphi 0, %s305
    %s320 = sphi 0, %s306
    %s324 = sphi 0, %s324
    %s326 = sphi 0, %s324
    %s327 = sphi 0, %s326
    %s341 = sphi 0, %s327
    %s345 = sphi 0, %s345
    %s347 = sphi 0, %s345
    %s348 = sphi 0, %s347
    %s362 = sphi 0, %s348
    %s366 = sphi 0, %s366
    %s368 = sphi 0, %s366
    %s369 = sphi 0, %s368
    %s383 = sphi 0, %s369
    %s387 = sphi 0, %s387
    %s389 = sphi 0, %s387
    %s390 = sphi 0, %s389
    %s404 = sphi 0, %s390
    %s408 = sphi 0, %s408
    %s410 = sphi 0, %s408
    %s411 = sphi 0, %s410
    %s425 = sphi 0, %s411
    %s429 = sphi 0, %s429
    %s431 = sphi 0, %s429
    %s432 = sphi 0, %s431
    %s446 = sphi 0, %s432
    %s450 = sphi 0, %s450
    %s452 = sphi 0, %s450
    %s453 = sphi 0, %s452
    %s467 = sphi 0, %s453
    %s471 = sphi 0, %s471
    %s473 = sphi 0, %s471
    %s474 = sphi 0, %s473
    %s488 = sphi 0, %s474
    %s492 = sphi 0, %s492
    %s494 = sphi 0, %s492
    %s495 = sphi 0, %s494
    %s509 = sphi 0, %s495
    %s515 = sphi 0, %s517
    %s518 = sphi 0, %s515
    %s519 = sphi 0, %s518
    %s535 = sphi 0, %s519
  $region4: #{stdf_forward.1} parent=0 // loop_header_branch
    %31 = sbr.rel (%p29) target = $region8
  $region5: #{stdf_forward.1} parent=0 // loop_body
    %s33 = ssub.s32 %s28, 1
    %s34 = ssub.s32 %s28, 2
    %s35 = sadd.s32 %s28, 1
    %s36 = ssub.s32 %s28, %s35
    %p37 = scmp.eq.s32.totalorder %s36, 0
    %s39 = sadd.s32 %s38, 1
    %s40 = scalar_select %p37, %s38, %s39
    %p43 = pneg %p37
    %p44 = scmp.eq.s32.totalorder %s28, 1
    %p45 = por %p43, %p44
    %p46 = scmp.ne.s32.totalorder %s38, %s41
    %p47 = scmp.eq.s32.totalorder %s28, 0
    %p48 = por %p46, %p47
    %p49 = scmp.ne.s32.totalorder %s38, %s41
    %p50 = scmp.eq.s32.totalorder %s33, 1
    %p51 = por %p49, %p50
    %p52 = scmp.ne.s32.totalorder %s41, %s42
    %p53 = scmp.eq.s32.totalorder %s33, 0
    %p54 = por %p52, %p53
    %p55 = scmp.ne.s32.totalorder %s41, %s42
    %p56 = scmp.eq.s32.totalorder %s34, 1
    %p57 = por %p55, %p56
    %p59 = scmp.ne.s32.totalorder %s42, %s58
    %p60 = scmp.eq.s32.totalorder %s34, 0
    %p61 = por %p59, %p60
    %s62 = ssub.s32 %s28, %s35
    %p63 = scmp.eq.s32.totalorder %s62, 0
    %s65 = sadd.s32 %s64, 1
    %s66 = scalar_select %p63, %s64, %s65
    %p69 = pneg %p63
    %p70 = scmp.eq.s32.totalorder %s28, 1
    %p71 = por %p69, %p70
    %p72 = scmp.ne.s32.totalorder %s64, %s67
    %p73 = scmp.eq.s32.totalorder %s28, 0
    %p74 = por %p72, %p73
    %p75 = scmp.ne.s32.totalorder %s64, %s67
    %p76 = scmp.eq.s32.totalorder %s33, 1
    %p77 = por %p75, %p76
    %p78 = scmp.ne.s32.totalorder %s67, %s68
    %p79 = scmp.eq.s32.totalorder %s33, 0
    %p80 = por %p78, %p79
    %p81 = scmp.ne.s32.totalorder %s67, %s68
    %p82 = scmp.eq.s32.totalorder %s34, 1
    %p83 = por %p81, %p82
    %p85 = scmp.ne.s32.totalorder %s68, %s84
    %p86 = scmp.eq.s32.totalorder %s34, 0
    %p87 = por %p85, %p86
    %s88 = ssub.s32 %s28, %s35
    %p89 = scmp.eq.s32.totalorder %s88, 0
    %s91 = sadd.s32 %s90, 1
    %s92 = scalar_select %p89, %s90, %s91
    %p95 = pneg %p89
    %p96 = scmp.eq.s32.totalorder %s28, 1
    %p97 = por %p95, %p96
    %p98 = scmp.ne.s32.totalorder %s90, %s93
    %p99 = scmp.eq.s32.totalorder %s28, 0
    %p100 = por %p98, %p99
    %p101 = scmp.ne.s32.totalorder %s90, %s93
    %p102 = scmp.eq.s32.totalorder %s33, 1
    %p103 = por %p101, %p102
    %p104 = scmp.ne.s32.totalorder %s93, %s94
    %p105 = scmp.eq.s32.totalorder %s33, 0
    %p106 = por %p104, %p105
    %p107 = scmp.ne.s32.totalorder %s93, %s94
    %p108 = scmp.eq.s32.totalorder %s34, 1
    %p109 = por %p107, %p108
    %p111 = scmp.ne.s32.totalorder %s94, %s110
    %p112 = scmp.eq.s32.totalorder %s34, 0
    %p113 = por %p111, %p112
    %s115 = sadd.s32 %s114, 1
    %p118 = scmp.eq.s32.totalorder %s28, 1
    %p119 = scmp.ne.s32.totalorder %s114, %s116
    %p120 = scmp.eq.s32.totalorder %s28, 0
    %p121 = por %p119, %p120
    %p122 = scmp.ne.s32.totalorder %s114, %s116
    %p123 = scmp.eq.s32.totalorder %s33, 1
    %p124 = por %p122, %p123
    %p125 = scmp.ne.s32.totalorder %s116, %s117
    %p126 = scmp.eq.s32.totalorder %s33, 0
    %p127 = por %p125, %p126
    %p128 = scmp.ne.s32.totalorder %s116, %s117
    %p129 = scmp.eq.s32.totalorder %s34, 1
    %p130 = por %p128, %p129
    %p132 = scmp.ne.s32.totalorder %s117, %s131
    %p133 = scmp.eq.s32.totalorder %s34, 0
    %p134 = por %p132, %p133
    %s136 = sadd.s32 %s135, 1
    %p139 = scmp.eq.s32.totalorder %s28, 1
    %p140 = scmp.ne.s32.totalorder %s135, %s137
    %p141 = scmp.eq.s32.totalorder %s28, 0
    %p142 = por %p140, %p141
    %p143 = scmp.ne.s32.totalorder %s135, %s137
    %p144 = scmp.eq.s32.totalorder %s33, 1
    %p145 = por %p143, %p144
    %p146 = scmp.ne.s32.totalorder %s137, %s138
    %p147 = scmp.eq.s32.totalorder %s33, 0
    %p148 = por %p146, %p147
    %p149 = scmp.ne.s32.totalorder %s137, %s138
    %p150 = scmp.eq.s32.totalorder %s34, 1
    %p151 = por %p149, %p150
    %p153 = scmp.ne.s32.totalorder %s138, %s152
    %p154 = scmp.eq.s32.totalorder %s34, 0
    %p155 = por %p153, %p154
    %s157 = sadd.s32 %s156, 1
    %p160 = scmp.eq.s32.totalorder %s28, 1
    %p161 = scmp.ne.s32.totalorder %s156, %s158
    %p162 = scmp.eq.s32.totalorder %s28, 0
    %p163 = por %p161, %p162
    %p164 = scmp.ne.s32.totalorder %s156, %s158
    %p165 = scmp.eq.s32.totalorder %s33, 1
    %p166 = por %p164, %p165
    %p167 = scmp.ne.s32.totalorder %s158, %s159
    %p168 = scmp.eq.s32.totalorder %s33, 0
    %p169 = por %p167, %p168
    %p170 = scmp.ne.s32.totalorder %s158, %s159
    %p171 = scmp.eq.s32.totalorder %s34, 1
    %p172 = por %p170, %p171
    %p174 = scmp.ne.s32.totalorder %s159, %s173
    %p175 = scmp.eq.s32.totalorder %s34, 0
    %p176 = por %p174, %p175
    %s178 = sadd.s32 %s177, 1
    %p181 = scmp.eq.s32.totalorder %s28, 1
    %p182 = scmp.ne.s32.totalorder %s177, %s179
    %p183 = scmp.eq.s32.totalorder %s28, 0
    %p184 = por %p182, %p183
    %p185 = scmp.ne.s32.totalorder %s177, %s179
    %p186 = scmp.eq.s32.totalorder %s33, 1
    %p187 = por %p185, %p186
    %p188 = scmp.ne.s32.totalorder %s179, %s180
    %p189 = scmp.eq.s32.totalorder %s33, 0
    %p190 = por %p188, %p189
    %p191 = scmp.ne.s32.totalorder %s179, %s180
    %p192 = scmp.eq.s32.totalorder %s34, 1
    %p193 = por %p191, %p192
    %p195 = scmp.ne.s32.totalorder %s180, %s194
    %p196 = scmp.eq.s32.totalorder %s34, 0
    %p197 = por %p195, %p196
    %s199 = sadd.s32 %s198, 1
    %p202 = scmp.eq.s32.totalorder %s28, 1
    %p203 = scmp.ne.s32.totalorder %s198, %s200
    %p204 = scmp.eq.s32.totalorder %s28, 0
    %p205 = por %p203, %p204
    %p206 = scmp.ne.s32.totalorder %s198, %s200
    %p207 = scmp.eq.s32.totalorder %s33, 1
    %p208 = por %p206, %p207
    %p209 = scmp.ne.s32.totalorder %s200, %s201
    %p210 = scmp.eq.s32.totalorder %s33, 0
    %p211 = por %p209, %p210
    %p212 = scmp.ne.s32.totalorder %s200, %s201
    %p213 = scmp.eq.s32.totalorder %s34, 1
    %p214 = por %p212, %p213
    %p216 = scmp.ne.s32.totalorder %s201, %s215
    %p217 = scmp.eq.s32.totalorder %s34, 0
    %p218 = por %p216, %p217
    %s220 = sadd.s32 %s219, 1
    %p223 = scmp.eq.s32.totalorder %s28, 1
    %p224 = scmp.ne.s32.totalorder %s219, %s221
    %p225 = scmp.eq.s32.totalorder %s28, 0
    %p226 = por %p224, %p225
    %p227 = scmp.ne.s32.totalorder %s219, %s221
    %p228 = scmp.eq.s32.totalorder %s33, 1
    %p229 = por %p227, %p228
    %p230 = scmp.ne.s32.totalorder %s221, %s222
    %p231 = scmp.eq.s32.totalorder %s33, 0
    %p232 = por %p230, %p231
    %p233 = scmp.ne.s32.totalorder %s221, %s222
    %p234 = scmp.eq.s32.totalorder %s34, 1
    %p235 = por %p233, %p234
    %p237 = scmp.ne.s32.totalorder %s222, %s236
    %p238 = scmp.eq.s32.totalorder %s34, 0
    %p239 = por %p237, %p238
    %s241 = sadd.s32 %s240, 1
    %p244 = scmp.eq.s32.totalorder %s28, 1
    %p245 = scmp.ne.s32.totalorder %s240, %s242
    %p246 = scmp.eq.s32.totalorder %s28, 0
    %p247 = por %p245, %p246
    %p248 = scmp.ne.s32.totalorder %s240, %s242
    %p249 = scmp.eq.s32.totalorder %s33, 1
    %p250 = por %p248, %p249
    %p251 = scmp.ne.s32.totalorder %s242, %s243
    %p252 = scmp.eq.s32.totalorder %s33, 0
    %p253 = por %p251, %p252
    %p254 = scmp.ne.s32.totalorder %s242, %s243
    %p255 = scmp.eq.s32.totalorder %s34, 1
    %p256 = por %p254, %p255
    %p258 = scmp.ne.s32.totalorder %s243, %s257
    %p259 = scmp.eq.s32.totalorder %s34, 0
    %p260 = por %p258, %p259
    %s262 = sadd.s32 %s261, 1
    %p265 = scmp.eq.s32.totalorder %s28, 1
    %p266 = scmp.ne.s32.totalorder %s261, %s263
    %p267 = scmp.eq.s32.totalorder %s28, 0
    %p268 = por %p266, %p267
    %p269 = scmp.ne.s32.totalorder %s261, %s263
    %p270 = scmp.eq.s32.totalorder %s33, 1
    %p271 = por %p269, %p270
    %p272 = scmp.ne.s32.totalorder %s263, %s264
    %p273 = scmp.eq.s32.totalorder %s33, 0
    %p274 = por %p272, %p273
    %p275 = scmp.ne.s32.totalorder %s263, %s264
    %p276 = scmp.eq.s32.totalorder %s34, 1
    %p277 = por %p275, %p276
    %p279 = scmp.ne.s32.totalorder %s264, %s278
    %p280 = scmp.eq.s32.totalorder %s34, 0
    %p281 = por %p279, %p280
    %s283 = sadd.s32 %s282, 1
    %p286 = scmp.eq.s32.totalorder %s28, 1
    %p287 = scmp.ne.s32.totalorder %s282, %s284
    %p288 = scmp.eq.s32.totalorder %s28, 0
    %p289 = por %p287, %p288
    %p290 = scmp.ne.s32.totalorder %s282, %s284
    %p291 = scmp.eq.s32.totalorder %s33, 1
    %p292 = por %p290, %p291
    %p293 = scmp.ne.s32.totalorder %s284, %s285
    %p294 = scmp.eq.s32.totalorder %s33, 0
    %p295 = por %p293, %p294
    %p296 = scmp.ne.s32.totalorder %s284, %s285
    %p297 = scmp.eq.s32.totalorder %s34, 1
    %p298 = por %p296, %p297
    %p300 = scmp.ne.s32.totalorder %s285, %s299
    %p301 = scmp.eq.s32.totalorder %s34, 0
    %p302 = por %p300, %p301
    %s304 = sadd.s32 %s303, 1
    %p307 = scmp.eq.s32.totalorder %s28, 1
    %p308 = scmp.ne.s32.totalorder %s303, %s305
    %p309 = scmp.eq.s32.totalorder %s28, 0
    %p310 = por %p308, %p309
    %p311 = scmp.ne.s32.totalorder %s303, %s305
    %p312 = scmp.eq.s32.totalorder %s33, 1
    %p313 = por %p311, %p312
    %p314 = scmp.ne.s32.totalorder %s305, %s306
    %p315 = scmp.eq.s32.totalorder %s33, 0
    %p316 = por %p314, %p315
    %p317 = scmp.ne.s32.totalorder %s305, %s306
    %p318 = scmp.eq.s32.totalorder %s34, 1
    %p319 = por %p317, %p318
    %p321 = scmp.ne.s32.totalorder %s306, %s320
    %p322 = scmp.eq.s32.totalorder %s34, 0
    %p323 = por %p321, %p322
    %s325 = sadd.s32 %s324, 1
    %p328 = scmp.eq.s32.totalorder %s28, 1
    %p329 = scmp.ne.s32.totalorder %s324, %s326
    %p330 = scmp.eq.s32.totalorder %s28, 0
    %p331 = por %p329, %p330
    %p332 = scmp.ne.s32.totalorder %s324, %s326
    %p333 = scmp.eq.s32.totalorder %s33, 1
    %p334 = por %p332, %p333
    %p335 = scmp.ne.s32.totalorder %s326, %s327
    %p336 = scmp.eq.s32.totalorder %s33, 0
    %p337 = por %p335, %p336
    %p338 = scmp.ne.s32.totalorder %s326, %s327
    %p339 = scmp.eq.s32.totalorder %s34, 1
    %p340 = por %p338, %p339
    %p342 = scmp.ne.s32.totalorder %s327, %s341
    %p343 = scmp.eq.s32.totalorder %s34, 0
    %p344 = por %p342, %p343
    %s346 = sadd.s32 %s345, 1
    %p349 = scmp.eq.s32.totalorder %s28, 1
    %p350 = scmp.ne.s32.totalorder %s345, %s347
    %p351 = scmp.eq.s32.totalorder %s28, 0
    %p352 = por %p350, %p351
    %p353 = scmp.ne.s32.totalorder %s345, %s347
    %p354 = scmp.eq.s32.totalorder %s33, 1
    %p355 = por %p353, %p354
    %p356 = scmp.ne.s32.totalorder %s347, %s348
    %p357 = scmp.eq.s32.totalorder %s33, 0
    %p358 = por %p356, %p357
    %p359 = scmp.ne.s32.totalorder %s347, %s348
    %p360 = scmp.eq.s32.totalorder %s34, 1
    %p361 = por %p359, %p360
    %p363 = scmp.ne.s32.totalorder %s348, %s362
    %p364 = scmp.eq.s32.totalorder %s34, 0
    %p365 = por %p363, %p364
    %s367 = sadd.s32 %s366, 1
    %p370 = scmp.eq.s32.totalorder %s28, 1
    %p371 = scmp.ne.s32.totalorder %s366, %s368
    %p372 = scmp.eq.s32.totalorder %s28, 0
    %p373 = por %p371, %p372
    %p374 = scmp.ne.s32.totalorder %s366, %s368
    %p375 = scmp.eq.s32.totalorder %s33, 1
    %p376 = por %p374, %p375
    %p377 = scmp.ne.s32.totalorder %s368, %s369
    %p378 = scmp.eq.s32.totalorder %s33, 0
    %p379 = por %p377, %p378
    %p380 = scmp.ne.s32.totalorder %s368, %s369
    %p381 = scmp.eq.s32.totalorder %s34, 1
    %p382 = por %p380, %p381
    %p384 = scmp.ne.s32.totalorder %s369, %s383
    %p385 = scmp.eq.s32.totalorder %s34, 0
    %p386 = por %p384, %p385
    %s388 = sadd.s32 %s387, 1
    %p391 = scmp.eq.s32.totalorder %s28, 1
    %p392 = scmp.ne.s32.totalorder %s387, %s389
    %p393 = scmp.eq.s32.totalorder %s28, 0
    %p394 = por %p392, %p393
    %p395 = scmp.ne.s32.totalorder %s387, %s389
    %p396 = scmp.eq.s32.totalorder %s33, 1
    %p397 = por %p395, %p396
    %p398 = scmp.ne.s32.totalorder %s389, %s390
    %p399 = scmp.eq.s32.totalorder %s33, 0
    %p400 = por %p398, %p399
    %p401 = scmp.ne.s32.totalorder %s389, %s390
    %p402 = scmp.eq.s32.totalorder %s34, 1
    %p403 = por %p401, %p402
    %p405 = scmp.ne.s32.totalorder %s390, %s404
    %p406 = scmp.eq.s32.totalorder %s34, 0
    %p407 = por %p405, %p406
    %s409 = sadd.s32 %s408, 1
    %p412 = scmp.eq.s32.totalorder %s28, 1
    %p413 = scmp.ne.s32.totalorder %s408, %s410
    %p414 = scmp.eq.s32.totalorder %s28, 0
    %p415 = por %p413, %p414
    %p416 = scmp.ne.s32.totalorder %s408, %s410
    %p417 = scmp.eq.s32.totalorder %s33, 1
    %p418 = por %p416, %p417
    %p419 = scmp.ne.s32.totalorder %s410, %s411
    %p420 = scmp.eq.s32.totalorder %s33, 0
    %p421 = por %p419, %p420
    %p422 = scmp.ne.s32.totalorder %s410, %s411
    %p423 = scmp.eq.s32.totalorder %s34, 1
    %p424 = por %p422, %p423
    %p426 = scmp.ne.s32.totalorder %s411, %s425
    %p427 = scmp.eq.s32.totalorder %s34, 0
    %p428 = por %p426, %p427
    %s430 = sadd.s32 %s429, 1
    %p433 = scmp.eq.s32.totalorder %s28, 1
    %p434 = scmp.ne.s32.totalorder %s429, %s431
    %p435 = scmp.eq.s32.totalorder %s28, 0
    %p436 = por %p434, %p435
    %p437 = scmp.ne.s32.totalorder %s429, %s431
    %p438 = scmp.eq.s32.totalorder %s33, 1
    %p439 = por %p437, %p438
    %p440 = scmp.ne.s32.totalorder %s431, %s432
    %p441 = scmp.eq.s32.totalorder %s33, 0
    %p442 = por %p440, %p441
    %p443 = scmp.ne.s32.totalorder %s431, %s432
    %p444 = scmp.eq.s32.totalorder %s34, 1
    %p445 = por %p443, %p444
    %p447 = scmp.ne.s32.totalorder %s432, %s446
    %p448 = scmp.eq.s32.totalorder %s34, 0
    %p449 = por %p447, %p448
    %s451 = sadd.s32 %s450, 1
    %p454 = scmp.eq.s32.totalorder %s28, 1
    %p455 = scmp.ne.s32.totalorder %s450, %s452
    %p456 = scmp.eq.s32.totalorder %s28, 0
    %p457 = por %p455, %p456
    %p458 = scmp.ne.s32.totalorder %s450, %s452
    %p459 = scmp.eq.s32.totalorder %s33, 1
    %p460 = por %p458, %p459
    %p461 = scmp.ne.s32.totalorder %s452, %s453
    %p462 = scmp.eq.s32.totalorder %s33, 0
    %p463 = por %p461, %p462
    %p464 = scmp.ne.s32.totalorder %s452, %s453
    %p465 = scmp.eq.s32.totalorder %s34, 1
    %p466 = por %p464, %p465
    %p468 = scmp.ne.s32.totalorder %s453, %s467
    %p469 = scmp.eq.s32.totalorder %s34, 0
    %p470 = por %p468, %p469
    %s472 = sadd.s32 %s471, 1
    %p475 = scmp.eq.s32.totalorder %s28, 1
    %p476 = scmp.ne.s32.totalorder %s471, %s473
    %p477 = scmp.eq.s32.totalorder %s28, 0
    %p478 = por %p476, %p477
    %p479 = scmp.ne.s32.totalorder %s471, %s473
    %p480 = scmp.eq.s32.totalorder %s33, 1
    %p481 = por %p479, %p480
    %p482 = scmp.ne.s32.totalorder %s473, %s474
    %p483 = scmp.eq.s32.totalorder %s33, 0
    %p484 = por %p482, %p483
    %p485 = scmp.ne.s32.totalorder %s473, %s474
    %p486 = scmp.eq.s32.totalorder %s34, 1
    %p487 = por %p485, %p486
    %p489 = scmp.ne.s32.totalorder %s474, %s488
    %p490 = scmp.eq.s32.totalorder %s34, 0
    %p491 = por %p489, %p490
    %s493 = sadd.s32 %s492, 1
    %p496 = scmp.eq.s32.totalorder %s28, 1
    %p497 = scmp.ne.s32.totalorder %s492, %s494
    %p498 = scmp.eq.s32.totalorder %s28, 0
    %p499 = por %p497, %p498
    %p500 = scmp.ne.s32.totalorder %s492, %s494
    %p501 = scmp.eq.s32.totalorder %s33, 1
    %p502 = por %p500, %p501
    %p503 = scmp.ne.s32.totalorder %s494, %s495
    %p504 = scmp.eq.s32.totalorder %s33, 0
    %p505 = por %p503, %p504
    %p506 = scmp.ne.s32.totalorder %s494, %s495
    %p507 = scmp.eq.s32.totalorder %s34, 1
    %p508 = por %p506, %p507
    %p510 = scmp.ne.s32.totalorder %s495, %s509
    %p511 = scmp.eq.s32.totalorder %s34, 0
    %p512 = por %p510, %p511
    %s513 = ssub.s32 %s28, %s35
    %p514 = scmp.eq.s32.totalorder %s513, 0
    %s516 = sadd.s32 %s515, 1
    %s517 = scalar_select %p514, %s515, %s516
    %p520 = pneg %p514
    %p521 = scmp.eq.s32.totalorder %s28, 1
    %p522 = por %p520, %p521
    %p523 = scmp.ne.s32.totalorder %s515, %s518
    %p524 = scmp.eq.s32.totalorder %s28, 0
    %p525 = por %p523, %p524
    %p526 = scmp.ne.s32.totalorder %s515, %s518
    %p527 = scmp.eq.s32.totalorder %s33, 1
    %p528 = por %p526, %p527
    %p529 = scmp.ne.s32.totalorder %s518, %s519
    %p530 = scmp.eq.s32.totalorder %s33, 0
    %p531 = por %p529, %p530
    %p532 = scmp.ne.s32.totalorder %s518, %s519
    %p533 = scmp.eq.s32.totalorder %s34, 1
    %p534 = por %p532, %p533
    %p536 = scmp.ne.s32.totalorder %s519, %s535
    %p537 = scmp.eq.s32.totalorder %s34, 0
    %p538 = por %p536, %p537
    %p539 = scmp.le.s32.totalorder 1, %s28
    %p540 = scmp.lt.s32.totalorder %s28, 3
    %p541 = pnand %p539, %p540
    %p542 = pneg %p541
    // Predicated region
    $region9: #{stdf_forward.1} parent=5 // pred_check
      _
    $region10: #{stdf_forward.1} parent=5 // pred_check_branch
      %544 = sbr.rel (%p541) target = $region12
    $region11: #{stdf_forward.1} parent=5 // pred_region
      %s545 = ssub.s32 %s28, 1
      // Predicated region
      $region13: #{stdf_forward.1} parent=11 // pred_check
        %p546 = pneg %p127
      $region14: #{stdf_forward.1} parent=11 // pred_check_branch
        %548 = sbr.rel (%p546) target = $region16
      $region15: #{stdf_forward.1} parent=11 // pred_region
        _
      $region16: #{stdf_forward.1} parent=11 // pred_fallthru
        _
      // Predicated region
      $region17: #{stdf_forward.1} parent=11 // pred_check
        %p549 = pneg %p148
      $region18: #{stdf_forward.1} parent=11 // pred_check_branch
        %551 = sbr.rel (%p549) target = $region20
      $region19: #{stdf_forward.1} parent=11 // pred_region
        _
      $region20: #{stdf_forward.1} parent=11 // pred_fallthru
        _
      // Predicated region
      $region21: #{stdf_forward.1} parent=11 // pred_check
        %p552 = pneg %p169
      $region22: #{stdf_forward.1} parent=11 // pred_check_branch
        %554 = sbr.rel (%p552) target = $region24
      $region23: #{stdf_forward.1} parent=11 // pred_region
        _
      $region24: #{stdf_forward.1} parent=11 // pred_fallthru
        _
      // Predicated region
      $region25: #{stdf_forward.1} parent=11 // pred_check
        %p555 = pneg %p190
      $region26: #{stdf_forward.1} parent=11 // pred_check_branch
        %557 = sbr.rel (%p555) target = $region28
      $region27: #{stdf_forward.1} parent=11 // pred_region
        _
      $region28: #{stdf_forward.1} parent=11 // pred_fallthru
        _
      // Predicated region
      $region29: #{stdf_forward.1} parent=11 // pred_check
        %p558 = pneg %p211
      $region30: #{stdf_forward.1} parent=11 // pred_check_branch
        %560 = sbr.rel (%p558) target = $region32
      $region31: #{stdf_forward.1} parent=11 // pred_region
        _
      $region32: #{stdf_forward.1} parent=11 // pred_fallthru
        _
      // Predicated region
      $region33: #{stdf_forward.1} parent=11 // pred_check
        %p561 = pneg %p232
      $region34: #{stdf_forward.1} parent=11 // pred_check_branch
        %563 = sbr.rel (%p561) target = $region36
      $region35: #{stdf_forward.1} parent=11 // pred_region
        _
      $region36: #{stdf_forward.1} parent=11 // pred_fallthru
        _
      // Predicated region
      $region37: #{stdf_forward.1} parent=11 // pred_check
        %p564 = pneg %p253
      $region38: #{stdf_forward.1} parent=11 // pred_check_branch
        %566 = sbr.rel (%p564) target = $region40
      $region39: #{stdf_forward.1} parent=11 // pred_region
        _
      $region40: #{stdf_forward.1} parent=11 // pred_fallthru
        _
      // Predicated region
      $region41: #{stdf_forward.1} parent=11 // pred_check
        %p567 = pneg %p274
      $region42: #{stdf_forward.1} parent=11 // pred_check_branch
        %569 = sbr.rel (%p567) target = $region44
      $region43: #{stdf_forward.1} parent=11 // pred_region
        _
      $region44: #{stdf_forward.1} parent=11 // pred_fallthru
        _
      // Predicated region
      $region45: #{stdf_forward.1} parent=11 // pred_check
        %p570 = pneg %p295
      $region46: #{stdf_forward.1} parent=11 // pred_check_branch
        %572 = sbr.rel (%p570) target = $region48
      $region47: #{stdf_forward.1} parent=11 // pred_region
        _
      $region48: #{stdf_forward.1} parent=11 // pred_fallthru
        _
      // Predicated region
      $region49: #{stdf_forward.1} parent=11 // pred_check
        %p573 = pneg %p316
      $region50: #{stdf_forward.1} parent=11 // pred_check_branch
        %575 = sbr.rel (%p573) target = $region52
      $region51: #{stdf_forward.1} parent=11 // pred_region
        _
      $region52: #{stdf_forward.1} parent=11 // pred_fallthru
        _
      // Predicated region
      $region53: #{stdf_forward.1} parent=11 // pred_check
        %p576 = pneg %p337
      $region54: #{stdf_forward.1} parent=11 // pred_check_branch
        %578 = sbr.rel (%p576) target = $region56
      $region55: #{stdf_forward.1} parent=11 // pred_region
        _
      $region56: #{stdf_forward.1} parent=11 // pred_fallthru
        _
      // Predicated region
      $region57: #{stdf_forward.1} parent=11 // pred_check
        %p579 = pneg %p358
      $region58: #{stdf_forward.1} parent=11 // pred_check_branch
        %581 = sbr.rel (%p579) target = $region60
      $region59: #{stdf_forward.1} parent=11 // pred_region
        _
      $region60: #{stdf_forward.1} parent=11 // pred_fallthru
        _
      // Predicated region
      $region61: #{stdf_forward.1} parent=11 // pred_check
        %p582 = pneg %p379
      $region62: #{stdf_forward.1} parent=11 // pred_check_branch
        %584 = sbr.rel (%p582) target = $region64
      $region63: #{stdf_forward.1} parent=11 // pred_region
        _
      $region64: #{stdf_forward.1} parent=11 // pred_fallthru
        _
      // Predicated region
      $region65: #{stdf_forward.1} parent=11 // pred_check
        %p585 = pneg %p400
      $region66: #{stdf_forward.1} parent=11 // pred_check_branch
        %587 = sbr.rel (%p585) target = $region68
      $region67: #{stdf_forward.1} parent=11 // pred_region
        _
      $region68: #{stdf_forward.1} parent=11 // pred_fallthru
        _
      // Predicated region
      $region69: #{stdf_forward.1} parent=11 // pred_check
        %p588 = pneg %p421
      $region70: #{stdf_forward.1} parent=11 // pred_check_branch
        %590 = sbr.rel (%p588) target = $region72
      $region71: #{stdf_forward.1} parent=11 // pred_region
        _
      $region72: #{stdf_forward.1} parent=11 // pred_fallthru
        _
      // Predicated region
      $region73: #{stdf_forward.1} parent=11 // pred_check
        %p591 = pneg %p442
      $region74: #{stdf_forward.1} parent=11 // pred_check_branch
        %593 = sbr.rel (%p591) target = $region76
      $region75: #{stdf_forward.1} parent=11 // pred_region
        _
      $region76: #{stdf_forward.1} parent=11 // pred_fallthru
        _
      // Predicated region
      $region77: #{stdf_forward.1} parent=11 // pred_check
        %p594 = pneg %p463
      $region78: #{stdf_forward.1} parent=11 // pred_check_branch
        %596 = sbr.rel (%p594) target = $region80
      $region79: #{stdf_forward.1} parent=11 // pred_region
        _
      $region80: #{stdf_forward.1} parent=11 // pred_fallthru
        _
      // Predicated region
      $region81: #{stdf_forward.1} parent=11 // pred_check
        %p597 = pneg %p484
      $region82: #{stdf_forward.1} parent=11 // pred_check_branch
        %599 = sbr.rel (%p597) target = $region84
      $region83: #{stdf_forward.1} parent=11 // pred_region
        _
      $region84: #{stdf_forward.1} parent=11 // pred_fallthru
        _
      // Predicated region
      $region85: #{stdf_forward.1} parent=11 // pred_check
        %p600 = pneg %p505
      $region86: #{stdf_forward.1} parent=11 // pred_check_branch
        %602 = sbr.rel (%p600) target = $region88
      $region87: #{stdf_forward.1} parent=11 // pred_region
        _
      $region88: #{stdf_forward.1} parent=11 // pred_fallthru
        _
    $region12: #{stdf_forward.1} parent=5 // pred_fallthru
      _
    %p603 = scmp.lt.s32.totalorder %s28, 2
    // Predicated region
    $region89: #{stdf_forward.1} parent=5 // pred_check
      %p604 = pneg %p603
    $region90: #{stdf_forward.1} parent=5 // pred_check_branch
      %606 = sbr.rel (%p604) target = $region92
    $region91: #{stdf_forward.1} parent=5 // pred_region
      // Predicated region
      $region93: #{stdf_forward.1} parent=91 // pred_check
        %p607 = pneg %p48
      $region94: #{stdf_forward.1} parent=91 // pred_check_branch
        %609 = sbr.rel (%p607) target = $region96
      $region95: #{stdf_forward.1} parent=91 // pred_region
        %s610 = smul.u32 2, %s28
        %p611 = scmp.lt.s32.totalorder %s610, 3
        %s612 = scalar_select %p611, %s610, 3
        %s613 = smul.addr %s612, 2
        %s614 = scalar_lea.vmem %s0, %s613
        %s615 = smul.u32 2, %s28
      $region96: #{stdf_forward.1} parent=91 // pred_fallthru
        _
      // Predicated region
      $region97: #{stdf_forward.1} parent=91 // pred_check
        %p616 = pneg %p74
      $region98: #{stdf_forward.1} parent=91 // pred_check_branch
        %618 = sbr.rel (%p616) target = $region100
      $region99: #{stdf_forward.1} parent=91 // pred_region
        %s619 = smul.u32 2, %s28
        %p620 = scmp.lt.s32.totalorder %s619, 3
        %s621 = scalar_select %p620, %s619, 3
        %s622 = smul.addr %s621, 4
        %s623 = scalar_lea.vmem %s1, %s622
        %s624 = smul.u32 2, %s28
      $region100: #{stdf_forward.1} parent=91 // pred_fallthru
        _
      // Predicated region
      $region101: #{stdf_forward.1} parent=91 // pred_check
        %p625 = pneg %p100
      $region102: #{stdf_forward.1} parent=91 // pred_check_branch
        %627 = sbr.rel (%p625) target = $region104
      $region103: #{stdf_forward.1} parent=91 // pred_region
        %s628 = smul.u32 2, %s28
        %p629 = scmp.lt.s32.totalorder %s628, 3
        %s630 = scalar_select %p629, %s628, 3
        %s631 = smul.addr %s630, 4
        %s632 = scalar_lea.vmem %s2, %s631
        %s633 = smul.u32 2, %s28
      $region104: #{stdf_forward.1} parent=91 // pred_fallthru
        _
    $region92: #{stdf_forward.1} parent=5 // pred_fallthru
      _
    %p634 = scmp.le.s32.totalorder 1, %s28
    %p635 = scmp.lt.s32.totalorder %s28, 3
    %p636 = pnand %p634, %p635
    %p637 = pneg %p636
    // Predicated region
    $region105: #{stdf_forward.1} parent=5 // pred_check
      _
    $region106: #{stdf_forward.1} parent=5 // pred_check_branch
      %639 = sbr.rel (%p636) target = $region108
    $region107: #{stdf_forward.1} parent=5 // pred_region
      %s640 = ssub.s32 %s28, 1
      %s641 = smul.u32 2, %s33
      %p642 = scmp.lt.s32.totalorder %s641, 3
      %s643 = scalar_select %p642, %s641, 3
      %s644 = smul.addr %s643, 2
      %s645 = scalar_lea.vmem %s0, %s644
      %p646 = pneg %p54
      %p647 = pneg %p51
      %s648 = smul.u32 2, %s33
      %p649 = scmp.lt.s32.totalorder %s648, 3
      %s650 = scalar_select %p649, %s648, 3
      %s651 = smul.addr %s650, 4
      %s652 = scalar_lea.vmem %s1, %s651
      %p653 = pneg %p80
      %p654 = pneg %p77
      %s655 = smul.u32 2, %s33
      %p656 = scmp.lt.s32.totalorder %s655, 3
      %s657 = scalar_select %p656, %s655, 3
      %s658 = smul.addr %s657, 4
      %s659 = scalar_lea.vmem %s2, %s658
      %p660 = pneg %p106
      %p661 = pneg %p103
      %p662 = pneg %p127
      %p663 = pneg %p124
      %p664 = pneg %p148
      %p665 = pneg %p145
      %p666 = pneg %p169
      %p667 = pneg %p166
      %p668 = pneg %p190
      %p669 = pneg %p187
      %p670 = pneg %p211
      %p671 = pneg %p208
      %p672 = pneg %p232
      %p673 = pneg %p229
      %p674 = pneg %p253
      %p675 = pneg %p250
      %p676 = pneg %p274
      %p677 = pneg %p271
      %p678 = pneg %p295
      %p679 = pneg %p292
      %p680 = pneg %p316
      %p681 = pneg %p313
      %p682 = pneg %p337
      %p683 = pneg %p334
      %p684 = pneg %p358
      %p685 = pneg %p355
      %p686 = pneg %p379
      %p687 = pneg %p376
      %p688 = pneg %p400
      %p689 = pneg %p397
      %p690 = pneg %p421
      %p691 = pneg %p418
      %p692 = pneg %p442
      %p693 = pneg %p439
      %p694 = pneg %p463
      %p695 = pneg %p460
      %p696 = pneg %p484
      %p697 = pneg %p481
      %p698 = pneg %p505
      %p699 = pneg %p502
      %p700 = pneg %p531
      %p701 = pneg %p528
      %s702 = smul.u32 2, %s33
      %p703 = scmp.lt.s32.totalorder %s702, 3
      %s704 = scalar_select %p703, %s702, 3
      %s705 = smul.addr %s704, 2
      %s706 = scalar_lea.vmem %s22, %s705
      %s707 = smul.u32 2, %s33
      %p708 = scmp.lt.s32.totalorder %s707, 3
      %s709 = scalar_select %p708, %s707, 3
      %s710 = smul.addr %s709, 2
      %s711 = scalar_lea.vmem %s0, %s710
      %s712 = smul.u32 2, %s33
      %s713 = smul.u32 2, %s33
      %p714 = scmp.lt.s32.totalorder %s713, 3
      %s715 = scalar_select %p714, %s713, 3
      %s716 = smul.addr %s715, 4
      %s717 = scalar_lea.vmem %s1, %s716
      %s718 = smul.u32 2, %s33
      %s719 = smul.u32 2, %s33
      %p720 = scmp.lt.s32.totalorder %s719, 3
      %s721 = scalar_select %p720, %s719, 3
      %s722 = smul.addr %s721, 4
      %s723 = scalar_lea.vmem %s2, %s722
      %s724 = smul.u32 2, %s33
      %s725 = smul.u32 2, %s33
      %p726 = scmp.lt.s32.totalorder %s725, 3
      %s727 = scalar_select %p726, %s725, 3
      %s728 = smul.addr %s727, 2
      %s729 = scalar_lea.vmem %s22, %s728
      %s730 = smul.u32 2, %s33
      %v732 = vld [vmem:[%s3] sm:$0xff]
      %v733 = vld [vmem:[%s3 + $0x8] sm:$0xff]
      %v734 = vld [vmem:[%s3 + $0x10] sm:$0xff]
      %v735 = vld [vmem:[%s3 + $0x18] sm:$0xff]
      %v736 = vld [vmem:[%s3 + $0x20] sm:$0xff]
      %v737 = vld [vmem:[%s3 + $0x28] sm:$0xff]
      %v738 = vld [vmem:[%s3 + $0x30] sm:$0xff]
      %v739 = vld [vmem:[%s3 + $0x38] sm:$0xff]
      %v740 = vld [vmem:[%s3 + $0x40] sm:$0xff]
      %v741 = vld [vmem:[%s3 + $0x48] sm:$0xff]
      %v742 = vld [vmem:[%s3 + $0x50] sm:$0xff]
      %v743 = vld [vmem:[%s3 + $0x58] sm:$0xff]
      %v744 = vld [vmem:[%s3 + $0x60] sm:$0xff]
      %v745 = vld [vmem:[%s3 + $0x68] sm:$0xff]
      %v746 = vld [vmem:[%s3 + $0x70] sm:$0xff]
      %v747 = vld [vmem:[%s3 + $0x78] sm:$0xff]
      %v748 = vld [vmem:[%s3 + $0x80] sm:$0xff]
      %v749 = vld [vmem:[%s3 + $0x88] sm:$0xff]
      %v750 = vld [vmem:[%s3 + $0x90] sm:$0xff]
      %v751 = vld [vmem:[%s3 + $0x98] sm:$0xff]
      %v752 = vld [vmem:[%s3 + $0xa0] sm:$0xff]
      %v753 = vld [vmem:[%s3 + $0xa8] sm:$0xff]
      %v754 = vld [vmem:[%s3 + $0xb0] sm:$0xff]
      %v755 = vld [vmem:[%s3 + $0xb8] sm:$0xff]
      %v756 = vld [vmem:[%s3 + $0xc0] sm:$0xff]
      %v757 = vld [vmem:[%s3 + $0xc8] sm:$0xff]
      %v758 = vld [vmem:[%s3 + $0xd0] sm:$0xff]
      %v759 = vld [vmem:[%s3 + $0xd8] sm:$0xff]
      %v760 = vld [vmem:[%s3 + $0xe0] sm:$0xff]
      %v761 = vld [vmem:[%s3 + $0xe8] sm:$0xff]
      %v762 = vld [vmem:[%s3 + $0xf0] sm:$0xff]
      %v763 = vld [vmem:[%s3 + $0xf8] sm:$0xff]
      %v764 = vld [vmem:[%s4] sm:$0x3]
      %v765 = vld [vmem:[%s5] sm:$0x3]
      %v766 = vld [vmem:[%s711] sm:$0xf]
      %v769 = vunpack.c.l.s4 1983009808
      %v770 = vunpack.c.0.s8 %v769
      %v771 = vlaneseq
      %v772 = vshrl.u32 %v771, 7
      %v773 = vsub.s32 %v770, %v772
      %v774 = vrot.slane %v766, %v773
      %v775 = vcombine.high %v774, %v774
      %v810 = vunpack.c.l.b16 %v732
      %v811 = vunpack.c.h.b16 %v732
      %v812 = vunpack.c.l.b16 %v733
      %v813 = vunpack.c.h.b16 %v733
      %v814 = vunpack.c.l.b16 %v734
      %v815 = vunpack.c.h.b16 %v734
      %v816 = vunpack.c.l.b16 %v735
      %v817 = vunpack.c.h.b16 %v735
      %v818 = vunpack.c.l.b16 %v736
      %v819 = vunpack.c.h.b16 %v736
      %v820 = vunpack.c.l.b16 %v737
      %v821 = vunpack.c.h.b16 %v737
      %v822 = vunpack.c.l.b16 %v738
      %v823 = vunpack.c.h.b16 %v738
      %v824 = vunpack.c.l.b16 %v739
      %v825 = vunpack.c.h.b16 %v739
      %v826 = vunpack.c.l.b16 %v740
      %v827 = vunpack.c.h.b16 %v740
      %v828 = vunpack.c.l.b16 %v741
      %v829 = vunpack.c.h.b16 %v741
      %v830 = vunpack.c.l.b16 %v742
      %v831 = vunpack.c.h.b16 %v742
      %v832 = vunpack.c.l.b16 %v743
      %v833 = vunpack.c.h.b16 %v743
      %v834 = vunpack.c.l.b16 %v744
      %v835 = vunpack.c.h.b16 %v744
      %v836 = vunpack.c.l.b16 %v745
      %v837 = vunpack.c.h.b16 %v745
      %v838 = vunpack.c.l.b16 %v746
      %v839 = vunpack.c.h.b16 %v746
      %v840 = vunpack.c.l.b16 %v747
      %v841 = vunpack.c.h.b16 %v747
      %v842 = vunpack.c.l.b16 %v748
      %v843 = vunpack.c.h.b16 %v748
      %v844 = vunpack.c.l.b16 %v749
      %v845 = vunpack.c.h.b16 %v749
      %v846 = vunpack.c.l.b16 %v750
      %v847 = vunpack.c.h.b16 %v750
      %v848 = vunpack.c.l.b16 %v751
      %v849 = vunpack.c.h.b16 %v751
      %v850 = vunpack.c.l.b16 %v752
      %v851 = vunpack.c.h.b16 %v752
      %v852 = vunpack.c.l.b16 %v753
      %v853 = vunpack.c.h.b16 %v753
      %v854 = vunpack.c.l.b16 %v754
      %v855 = vunpack.c.h.b16 %v754
      %v856 = vunpack.c.l.b16 %v755
      %v857 = vunpack.c.h.b16 %v755
      %v858 = vunpack.c.l.b16 %v756
      %v859 = vunpack.c.h.b16 %v756
      %v860 = vunpack.c.l.b16 %v757
      %v861 = vunpack.c.h.b16 %v757
      %v862 = vunpack.c.l.b16 %v758
      %v863 = vunpack.c.h.b16 %v758
      %v864 = vunpack.c.l.b16 %v759
      %v865 = vunpack.c.h.b16 %v759
      %v866 = vunpack.c.l.b16 %v760
      %v867 = vunpack.c.h.b16 %v760
      %v868 = vunpack.c.l.b16 %v761
      %v869 = vunpack.c.h.b16 %v761
      %v870 = vunpack.c.l.b16 %v762
      %v871 = vunpack.c.h.b16 %v762
      %v872 = vunpack.c.l.b16 %v763
      %v873 = vunpack.c.h.b16 %v763
      %v874 = vpack.c.b16 %v812, %v810
      %v875 = vpack.c.b16 %v813, %v811
      %v876 = vpack.c.b16 %v816, %v814
      %v877 = vpack.c.b16 %v817, %v815
      %v878 = vpack.c.b16 %v820, %v818
      %v879 = vpack.c.b16 %v821, %v819
      %v880 = vpack.c.b16 %v824, %v822
      %v881 = vpack.c.b16 %v825, %v823
      %v882 = vpack.c.b16 %v828, %v826
      %v883 = vpack.c.b16 %v829, %v827
      %v884 = vpack.c.b16 %v832, %v830
      %v885 = vpack.c.b16 %v833, %v831
      %v886 = vpack.c.b16 %v836, %v834
      %v887 = vpack.c.b16 %v837, %v835
      %v888 = vpack.c.b16 %v840, %v838
      %v889 = vpack.c.b16 %v841, %v839
      %v890 = vpack.c.b16 %v844, %v842
      %v891 = vpack.c.b16 %v845, %v843
      %v892 = vpack.c.b16 %v848, %v846
      %v893 = vpack.c.b16 %v849, %v847
      %v894 = vpack.c.b16 %v852, %v850
      %v895 = vpack.c.b16 %v853, %v851
      %v896 = vpack.c.b16 %v856, %v854
      %v897 = vpack.c.b16 %v857, %v855
      %v898 = vpack.c.b16 %v860, %v858
      %v899 = vpack.c.b16 %v861, %v859
      %v900 = vpack.c.b16 %v864, %v862
      %v901 = vpack.c.b16 %v865, %v863
      %v902 = vpack.c.b16 %v868, %v866
      %v903 = vpack.c.b16 %v869, %v867
      %v904 = vpack.c.b16 %v872, %v870
      %v905 = vpack.c.b16 %v873, %v871
      %938 = vmatprep.subr.bf16.mxu0 %v875
      %939 = vmatpush1.bf16.msra.mxu0 %v874
      %940 = vmatprep.subr.bf16.mxu0 %v877
      %941 = vmatpush1.bf16.msra.mxu0 %v876
      %942 = vmatprep.subr.bf16.mxu0 %v879
      %943 = vmatpush1.bf16.msra.mxu0 %v878
      %944 = vmatprep.subr.bf16.mxu0 %v881
      %945 = vmatpush1.bf16.msra.mxu0 %v880
      %946 = vmatprep.subr.bf16.mxu0 %v883
      %947 = vmatpush1.bf16.msra.mxu0 %v882
      %948 = vmatprep.subr.bf16.mxu0 %v885
      %949 = vmatpush1.bf16.msra.mxu0 %v884
      %950 = vmatprep.subr.bf16.mxu0 %v887
      %951 = vmatpush1.bf16.msra.mxu0 %v886
      %952 = vmatprep.subr.bf16.mxu0 %v889
      %953 = vmatpush1.bf16.msra.mxu0 %v888
      %954 = vmatprep.subr.bf16.mxu0 %v891
      %955 = vmatpush1.bf16.msra.mxu0 %v890
      %956 = vmatprep.subr.bf16.mxu0 %v893
      %957 = vmatpush1.bf16.msra.mxu0 %v892
      %958 = vmatprep.subr.bf16.mxu0 %v895
      %959 = vmatpush1.bf16.msra.mxu0 %v894
      %960 = vmatprep.subr.bf16.mxu0 %v897
      %961 = vmatpush1.bf16.msra.mxu0 %v896
      %962 = vmatprep.subr.bf16.mxu0 %v899
      %963 = vmatpush1.bf16.msra.mxu0 %v898
      %964 = vmatprep.subr.bf16.mxu0 %v901
      %965 = vmatpush1.bf16.msra.mxu0 %v900
      %966 = vmatprep.subr.bf16.mxu0 %v903
      %967 = vmatpush1.bf16.msra.mxu0 %v902
      %968 = vmatprep.subr.bf16.mxu0 %v905
      %969 = vmatpush1.bf16.msra.mxu0 %v904
      %970 = vmatprep.mubr.bf16.mxu0 %v775
      %971 = vmatmul.mubr.bf16.gmra.mrb[0].mxu0 %v774
      %v972 = vpop.f32.mrb[0].mxu0
      %v973 = vadd.f32 0.0, %v972
      %v974 = vpop.f32.mrb[0].mxu0
      %v975 = vadd.f32 0.0, %v974
      %v976 = vpop.f32.mrb[0].mxu0
      %v977 = vpop.f32.mrb[0].mxu0
      %978 = vdwg.mxu0
      %v979 = vld [vmem:[%s6] sm:$0xf]
      %v980 = vld [vmem:[%s6 + $0x4] sm:$0xf]
      %v981 = vld [vmem:[%s6 + $0x8] sm:$0xf]
      %v982 = vld [vmem:[%s6 + $0xc] sm:$0xf]
      %v983 = vpack.c.bf16 %v973, %v973
      %v984 = vpack.c.bf16 %v975, %v975
      %v985 = vld [vmem:[%s7] sm:$0xff]
      %v986 = vld [vmem:[%s7 + $0x8] sm:$0xff]
      %v987 = vld [vmem:[%s7 + $0x10] sm:$0xff]
      %v988 = vld [vmem:[%s7 + $0x18] sm:$0xff]
      %990 = vset.pattern.permute.xlu0 0
      %991 = vperm.xlu0 %990, %v985
      %v992 = vpop.permute.xlu0 %991
      %995 = vset.pattern.permute.xlu0 0
      %996 = vperm.xlu0 %995, %v986
      %v997 = vpop.permute.xlu0 %996
      %1000 = vset.pattern.permute.xlu0 0
      %1001 = vperm.xlu0 %1000, %v987
      %v1002 = vpop.permute.xlu0 %1001
      %1005 = vset.pattern.permute.xlu0 0
      %1006 = vperm.xlu0 %1005, %v988
      %v1007 = vpop.permute.xlu0 %1006
      %v1013 = vunpack.c.l.b16 %v979
      %v1014 = vunpack.c.l.b16 %v980
      %v1015 = vunpack.c.l.b16 %v981
      %v1016 = vunpack.c.l.b16 %v982
      %v1017 = vpack.c.b16 %v1014, %v1013
      %v1018 = vpack.c.b16 %v1016, %v1015
      %vm1019 = vcmask 31744
      %v1021 = vsel %vm1019, %v1017, 0
      %v1024 = vsel %vm1019, %v1018, 0
      %vm1026 = vcmask 1041408
      %v1028 = vsel %vm1026, %v983, 0
      %v1031 = vsel %vm1026, %v984, 0
      %1033 = vmatprep.subr.bf16.mxu0 %v1031
      %1034 = vmatpush1.bf16.msra.mxu0 %v1028
      %1035 = vmatprep.subr.bf16.mxu0 0
      %1036 = vmatpush1.bf16.msra.mxu0 0
      %1037 = vmatprep.subr.bf16.mxu0 0
      %1038 = vmatpush1.bf16.msra.mxu0 0
      %1039 = vmatprep.subr.bf16.mxu0 0
      %1040 = vmatpush1.bf16.msra.mxu0 0
      %1041 = vmatprep.subr.bf16.mxu0 0
      %1042 = vmatpush1.bf16.msra.mxu0 0
      %1043 = vmatprep.subr.bf16.mxu0 0
      %1044 = vmatpush1.bf16.msra.mxu0 0
      %1045 = vmatprep.subr.bf16.mxu0 0
      %1046 = vmatpush1.bf16.msra.mxu0 0
      %1047 = vmatprep.subr.bf16.mxu0 0
      %1048 = vmatpush1.bf16.msra.mxu0 0
      %1049 = vmatprep.subr.bf16.mxu0 0
      %1050 = vmatpush1.bf16.msra.mxu0 0
      %1051 = vmatprep.subr.bf16.mxu0 0
      %1052 = vmatpush1.bf16.msra.mxu0 0
      %1053 = vmatprep.subr.bf16.mxu0 0
      %1054 = vmatpush1.bf16.msra.mxu0 0
      %1055 = vmatprep.subr.bf16.mxu0 0
      %1056 = vmatpush1.bf16.msra.mxu0 0
      %1057 = vmatprep.subr.bf16.mxu0 0
      %1058 = vmatpush1.bf16.msra.mxu0 0
      %1059 = vmatprep.subr.bf16.mxu0 0
      %1060 = vmatpush1.bf16.msra.mxu0 0
      %1061 = vmatprep.subr.bf16.mxu0 0
      %1062 = vmatpush1.bf16.msra.mxu0 0
      %1063 = vmatprep.subr.bf16.mxu0 0
      %1064 = vmatpush1.bf16.msra.mxu0 0
      %1065 = vmatprep.mubr.bf16.mxu0 0
      %1066 = vmatmul.mubr.bf16.gmra.mrb[0].mxu0 %v1021
      %v1067 = vpop.f32.mrb[0].mxu0
      %v1068 = vadd.f32 %v992, %v1067
      %v1069 = vpop.f32.mrb[0].mxu0
      %v1070 = vadd.f32 %v992, %v1069
      %v1071 = vpop.f32.mrb[0].mxu0
      %v1072 = vadd.f32 %v997, %v1071
      %v1073 = vpop.f32.mrb[0].mxu0
      %v1074 = vadd.f32 %v997, %v1073
      %1075 = vmatprep.mubr.bf16.mxu0 0
      %1076 = vmatmul.mubr.bf16.gmra.mrb[0].mxu0 %v1024
      %v1077 = vpop.f32.mrb[0].mxu0
      %v1078 = vadd.f32 %v1002, %v1077
      %v1079 = vpop.f32.mrb[0].mxu0
      %v1080 = vadd.f32 %v1002, %v1079
      %v1081 = vpop.f32.mrb[0].mxu0
      %v1082 = vadd.f32 %v1007, %v1081
      %v1083 = vpop.f32.mrb[0].mxu0
      %v1084 = vadd.f32 %v1007, %v1083
      %1085 = vdwg.mxu0
      %v1086 = vmax.f32 %v1068, 0.0
      %v1087 = vmax.f32 %v1070, 0.0
      %v1088 = vmax.f32 %v1072, 0.0
      %v1089 = vmax.f32 %v1074, 0.0
      %v1090 = vmax.f32 %v1078, 0.0
      %v1091 = vmax.f32 %v1080, 0.0
      %v1092 = vmax.f32 %v1082, 0.0
      %v1093 = vmax.f32 %v1084, 0.0
      %1094 = vrot.lane.b32.xlu0 %v1086, 1
      %v1095 = vpop.permute.xlu0 %1094
      %1096 = vrot.lane.b32.xlu0 %v1088, 1
      %v1097 = vpop.permute.xlu0 %1096
      %1098 = vrot.lane.b32.xlu0 %v1090, 1
      %v1099 = vpop.permute.xlu0 %1098
      %1100 = vrot.lane.b32.xlu0 %v1092, 1
      %v1101 = vpop.permute.xlu0 %1100
      %1102 = vrot.lane.b32.xlu0 %v1087, 1
      %v1103 = vpop.permute.xlu0 %1102
      %1104 = vrot.lane.b32.xlu0 %v1089, 1
      %v1105 = vpop.permute.xlu0 %1104
      %1106 = vrot.lane.b32.xlu0 %v1091, 1
      %v1107 = vpop.permute.xlu0 %1106
      %1108 = vrot.lane.b32.xlu0 %v1093, 1
      %v1109 = vpop.permute.xlu0 %1108
      %v1110 = vlaneseq
      %v1111 = vand.u32 %v1110, 127
      %vm1112 = vcmp.lt.s32.totalorder %v1111, 1
      %v1113 = vsel %vm1112, %v1095, %v1103
      %v1114 = vsel %vm1112, %v1097, %v1105
      %v1115 = vsel %vm1112, %v1099, %v1107
      %v1116 = vsel %vm1112, %v1101, %v1109
      %v1117 = vsel %vm1112, %v1103, %v1095
      %v1118 = vsel %vm1112, %v1105, %v1097
      %v1119 = vsel %vm1112, %v1107, %v1099
      %v1120 = vsel %vm1112, %v1109, %v1101
      %v1122 = vlaneseq
      %v1123 = vshrl.u32 %v1122, 7
      %v1124 = vsub.s32 0, %v1123
      %v1125 = vrot.slane %v764, %v1124
      %v1126 = vlaneseq
      %v1127 = vshrl.u32 %v1126, 7
      %v1128 = vsub.s32 1, %v1127
      %v1129 = vrot.slane %v764, %v1128
      %v1132 = vmul.f32 %v1117, %v1125
      %v1133 = vmul.f32 %v1113, %v1129
      %v1134 = vmul.f32 %v1118, %v1125
      %v1135 = vmul.f32 %v1114, %v1129
      %v1136 = vmul.f32 %v1119, %v1125
      %v1137 = vmul.f32 %v1115, %v1129
      %v1138 = vmul.f32 %v1120, %v1125
      %v1139 = vmul.f32 %v1116, %v1129
      %1140 = vrot.lane.b32.xlu0 %v1086, 127
      %v1141 = vpop.permute.xlu0 %1140
      %1142 = vrot.lane.b32.xlu0 %v1088, 127
      %v1143 = vpop.permute.xlu0 %1142
      %1144 = vrot.lane.b32.xlu0 %v1090, 127
      %v1145 = vpop.permute.xlu0 %1144
      %1146 = vrot.lane.b32.xlu0 %v1092, 127
      %v1147 = vpop.permute.xlu0 %1146
      %1148 = vrot.lane.b32.xlu0 %v1087, 127
      %v1149 = vpop.permute.xlu0 %1148
      %1150 = vrot.lane.b32.xlu0 %v1089, 127
      %v1151 = vpop.permute.xlu0 %1150
      %1152 = vrot.lane.b32.xlu0 %v1091, 127
      %v1153 = vpop.permute.xlu0 %1152
      %1154 = vrot.lane.b32.xlu0 %v1093, 127
      %v1155 = vpop.permute.xlu0 %1154
      %vm1156 = vcmp.lt.s32.totalorder %v1111, 127
      %v1157 = vsel %vm1156, %v1141, %v1149
      %v1158 = vsel %vm1156, %v1143, %v1151
      %v1159 = vsel %vm1156, %v1145, %v1153
      %v1160 = vsel %vm1156, %v1147, %v1155
      %v1161 = vsel %vm1156, %v1149, %v1141
      %v1162 = vsel %vm1156, %v1151, %v1143
      %v1163 = vsel %vm1156, %v1153, %v1145
      %v1164 = vsel %vm1156, %v1155, %v1147
      %v1166 = vlaneseq
      %v1167 = vshrl.u32 %v1166, 7
      %v1168 = vsub.s32 0, %v1167
      %v1169 = vrot.slane %v765, %v1168
      %v1170 = vlaneseq
      %v1171 = vshrl.u32 %v1170, 7
      %v1172 = vsub.s32 1, %v1171
      %v1173 = vrot.slane %v765, %v1172
      %v1176 = vmul.f32 %v1157, %v1169
      %v1177 = vmul.f32 %v1161, %v1173
      %v1178 = vmul.f32 %v1158, %v1169
      %v1179 = vmul.f32 %v1162, %v1173
      %v1180 = vmul.f32 %v1159, %v1169
      %v1181 = vmul.f32 %v1163, %v1173
      %v1182 = vmul.f32 %v1160, %v1169
      %v1183 = vmul.f32 %v1164, %v1173
      %v1184 = vld [vmem:[%s8] sm:$0xf]
      %v1185 = vld [vmem:[%s8 + $0x4] sm:$0xf]
      %v1186 = vld [vmem:[%s8 + $0x8] sm:$0xf]
      %v1187 = vld [vmem:[%s8 + $0xc] sm:$0xf]
      %v1188 = vpack.c.bf16 %v1134, %v1132
      %v1189 = vpack.c.bf16 %v1135, %v1133
      %v1190 = vpack.c.bf16 %v1138, %v1136
      %v1191 = vpack.c.bf16 %v1139, %v1137
      %s1192 = scalar_lea.vmem %s8, 16
      %v1193 = vld [vmem:[%s1192] sm:$0xf]
      %v1194 = vld [vmem:[%s1192 + $0x4] sm:$0xf]
      %v1195 = vld [vmem:[%s1192 + $0x8] sm:$0xf]
      %v1196 = vld [vmem:[%s1192 + $0xc] sm:$0xf]
      %v1197 = vpack.c.bf16 %v1088, %v1086
      %v1198 = vpack.c.bf16 %v1089, %v1087
      %v1199 = vpack.c.bf16 %v1092, %v1090
      %v1200 = vpack.c.bf16 %v1093, %v1091
      %v1205 = vunpack.c.l.b16 %v1193
      %v1206 = vunpack.c.l.b16 %v1194
      %v1207 = vunpack.c.l.b16 %v1195
      %v1208 = vunpack.c.l.b16 %v1196
      %v1209 = vpack.c.b16 %v1206, %v1205
      %v1210 = vpack.c.b16 %v1208, %v1207
      %vm1211 = vcmask 261120
      %v1213 = vsel %vm1211, %v1209, 0
      %v1216 = vsel %vm1211, %v1210, 0
      %1218 = vmatprep.subr.bf16.mxu0 %v1198
      %1219 = vmatpush1.bf16.msra.mxu0 %v1197
      %1220 = vmatprep.subr.bf16.mxu0 %v1200
      %1221 = vmatpush1.bf16.msra.mxu0 %v1199
      %1222 = vmatprep.subr.bf16.mxu0 0
      %1223 = vmatpush1.bf16.msra.mxu0 0
      %1224 = vmatprep.subr.bf16.mxu0 0
      %1225 = vmatpush1.bf16.msra.mxu0 0
      %1226 = vmatprep.subr.bf16.mxu0 0
      %1227 = vmatpush1.bf16.msra.mxu0 0
      %1228 = vmatprep.subr.bf16.mxu0 0
      %1229 = vmatpush1.bf16.msra.mxu0 0
      %1230 = vmatprep.subr.bf16.mxu0 0
      %1231 = vmatpush1.bf16.msra.mxu0 0
      %1232 = vmatprep.subr.bf16.mxu0 0
      %1233 = vmatpush1.bf16.msra.mxu0 0
      %1234 = vmatprep.subr.bf16.mxu0 0
      %1235 = vmatpush1.bf16.msra.mxu0 0
      %1236 = vmatprep.subr.bf16.mxu0 0
      %1237 = vmatpush1.bf16.msra.mxu0 0
      %1238 = vmatprep.subr.bf16.mxu0 0
      %1239 = vmatpush1.bf16.msra.mxu0 0
      %1240 = vmatprep.subr.bf16.mxu0 0
      %1241 = vmatpush1.bf16.msra.mxu0 0
      %1242 = vmatprep.subr.bf16.mxu0 0
      %1243 = vmatpush1.bf16.msra.mxu0 0
      %1244 = vmatprep.subr.bf16.mxu0 0
      %1245 = vmatpush1.bf16.msra.mxu0 0
      %1246 = vmatprep.subr.bf16.mxu0 0
      %1247 = vmatpush1.bf16.msra.mxu0 0
      %1248 = vmatprep.subr.bf16.mxu0 0
      %1249 = vmatpush1.bf16.msra.mxu0 0
      %1250 = vmatprep.mubr.bf16.mxu0 0
      %1251 = vmatmul.mubr.bf16.gmra.mrb[0].mxu0 %v1213
      %v1252 = vpop.f32.mrb[0].mxu0
      %v1253 = vadd.f32 0.0, %v1252
      %v1254 = vpop.f32.mrb[0].mxu0
      %v1255 = vadd.f32 0.0, %v1254
      %v1256 = vpop.f32.mrb[0].mxu0
      %v1257 = vadd.f32 0.0, %v1256
      %v1258 = vpop.f32.mrb[0].mxu0
      %v1259 = vadd.f32 0.0, %v1258
      %1260 = vmatprep.mubr.bf16.mxu0 0
      %1261 = vmatmul.mubr.bf16.gmra.mrb[0].mxu0 %v1216
      %v1262 = vpop.f32.mrb[0].mxu0
      %v1263 = vadd.f32 0.0, %v1262
      %v1264 = vpop.f32.mrb[0].mxu0
      %v1265 = vadd.f32 0.0, %v1264
      %v1266 = vpop.f32.mrb[0].mxu0
      %v1267 = vadd.f32 0.0, %v1266
      %v1268 = vpop.f32.mrb[0].mxu0
      %v1269 = vadd.f32 0.0, %v1268
      %1270 = vdwg.mxu0
      %v1275 = vunpack.c.l.b16 %v1184
      %v1276 = vunpack.c.l.b16 %v1185
      %v1277 = vunpack.c.l.b16 %v1186
      %v1278 = vunpack.c.l.b16 %v1187
      %v1279 = vpack.c.b16 %v1276, %v1275
      %v1280 = vpack.c.b16 %v1278, %v1277
      %v1282 = vsel %vm1211, %v1279, 0
      %v1285 = vsel %vm1211, %v1280, 0
      %1287 = vmatprep.subr.bf16.mxu0 %v1189
      %1288 = vmatpush1.bf16.msra.mxu0 %v1188
      %1289 = vmatprep.subr.bf16.mxu0 %v1191
      %1290 = vmatpush1.bf16.msra.mxu0 %v1190
      %1291 = vmatprep.subr.bf16.mxu0 0
      %1292 = vmatpush1.bf16.msra.mxu0 0
      %1293 = vmatprep.subr.bf16.mxu0 0
      %1294 = vmatpush1.bf16.msra.mxu0 0
      %1295 = vmatprep.subr.bf16.mxu0 0
      %1296 = vmatpush1.bf16.msra.mxu0 0
      %1297 = vmatprep.subr.bf16.mxu0 0
      %1298 = vmatpush1.bf16.msra.mxu0 0
      %1299 = vmatprep.subr.bf16.mxu0 0
      %1300 = vmatpush1.bf16.msra.mxu0 0
      %1301 = vmatprep.subr.bf16.mxu0 0
      %1302 = vmatpush1.bf16.msra.mxu0 0
      %1303 = vmatprep.subr.bf16.mxu0 0
      %1304 = vmatpush1.bf16.msra.mxu0 0
      %1305 = vmatprep.subr.bf16.mxu0 0
      %1306 = vmatpush1.bf16.msra.mxu0 0
      %1307 = vmatprep.subr.bf16.mxu0 0
      %1308 = vmatpush1.bf16.msra.mxu0 0
      %1309 = vmatprep.subr.bf16.mxu0 0
      %1310 = vmatpush1.bf16.msra.mxu0 0
      %1311 = vmatprep.subr.bf16.mxu0 0
      %1312 = vmatpush1.bf16.msra.mxu0 0
      %1313 = vmatprep.subr.bf16.mxu0 0
      %1314 = vmatpush1.bf16.msra.mxu0 0
      %1315 = vmatprep.subr.bf16.mxu0 0
      %1316 = vmatpush1.bf16.msra.mxu0 0
      %1317 = vmatprep.subr.bf16.mxu0 0
      %1318 = vmatpush1.bf16.msra.mxu0 0
      %1319 = vmatprep.mubr.bf16.mxu0 0
      %1320 = vmatmul.mubr.bf16.gmra.mrb[0].mxu0 %v1282
      %v1321 = vpop.f32.mrb[0].mxu0
      %v1322 = vadd.f32 %v1253, %v1321
      %v1323 = vpop.f32.mrb[0].mxu0
      %v1324 = vadd.f32 %v1255, %v1323
      %v1325 = vpop.f32.mrb[0].mxu0
      %v1326 = vadd.f32 %v1257, %v1325
      %v1327 = vpop.f32.mrb[0].mxu0
      %v1328 = vadd.f32 %v1259, %v1327
      %1329 = vmatprep.mubr.bf16.mxu0 0
      %1330 = vmatmul.mubr.bf16.gmra.mrb[0].mxu0 %v1285
      %v1331 = vpop.f32.mrb[0].mxu0
      %v1332 = vadd.f32 %v1263, %v1331
      %v1333 = vpop.f32.mrb[0].mxu0
      %v1334 = vadd.f32 %v1265, %v1333
      %v1335 = vpop.f32.mrb[0].mxu0
      %v1336 = vadd.f32 %v1267, %v1335
      %v1337 = vpop.f32.mrb[0].mxu0
      %v1338 = vadd.f32 %v1269, %v1337
      %1339 = vdwg.mxu0
      %s1340 = scalar_lea.vmem %s8, 32
      %v1341 = vld [vmem:[%s1340] sm:$0xf]
      %v1342 = vld [vmem:[%s1340 + $0x4] sm:$0xf]
      %v1343 = vld [vmem:[%s1340 + $0x8] sm:$0xf]
      %v1344 = vld [vmem:[%s1340 + $0xc] sm:$0xf]
      %v1345 = vpack.c.bf16 %v1178, %v1176
      %v1346 = vpack.c.bf16 %v1179, %v1177
      %v1347 = vpack.c.bf16 %v1182, %v1180
      %v1348 = vpack.c.bf16 %v1183, %v1181
      %v1353 = vunpack.c.l.b16 %v1341
      %v1354 = vunpack.c.l.b16 %v1342
      %v1355 = vunpack.c.l.b16 %v1343
      %v1356 = vunpack.c.l.b16 %v1344
      %v1357 = vpack.c.b16 %v1354, %v1353
      %v1358 = vpack.c.b16 %v1356, %v1355
      %v1360 = vsel %vm1211, %v1357, 0
      %v1363 = vsel %vm1211, %v1358, 0
      %1365 = vmatprep.subr.bf16.mxu0 %v1346
      %1366 = vmatpush1.bf16.msra.mxu0 %v1345
      %1367 = vmatprep.subr.bf16.mxu0 %v1348
      %1368 = vmatpush1.bf16.msra.mxu0 %v1347
      %1369 = vmatprep.subr.bf16.mxu0 0
      %1370 = vmatpush1.bf16.msra.mxu0 0
      %1371 = vmatprep.subr.bf16.mxu0 0
      %1372 = vmatpush1.bf16.msra.mxu0 0
      %1373 = vmatprep.subr.bf16.mxu0 0
      %1374 = vmatpush1.bf16.msra.mxu0 0
      %1375 = vmatprep.subr.bf16.mxu0 0
      %1376 = vmatpush1.bf16.msra.mxu0 0
      %1377 = vmatprep.subr.bf16.mxu0 0
      %1378 = vmatpush1.bf16.msra.mxu0 0
      %1379 = vmatprep.subr.bf16.mxu0 0
      %1380 = vmatpush1.bf16.msra.mxu0 0
      %1381 = vmatprep.subr.bf16.mxu0 0
      %1382 = vmatpush1.bf16.msra.mxu0 0
      %1383 = vmatprep.subr.bf16.mxu0 0
      %1384 = vmatpush1.bf16.msra.mxu0 0
      %1385 = vmatprep.subr.bf16.mxu0 0
      %1386 = vmatpush1.bf16.msra.mxu0 0
      %1387 = vmatprep.subr.bf16.mxu0 0
      %1388 = vmatpush1.bf16.msra.mxu0 0
      %1389 = vmatprep.subr.bf16.mxu0 0
      %1390 = vmatpush1.bf16.msra.mxu0 0
      %1391 = vmatprep.subr.bf16.mxu0 0
      %1392 = vmatpush1.bf16.msra.mxu0 0
      %1393 = vmatprep.subr.bf16.mxu0 0
      %1394 = vmatpush1.bf16.msra.mxu0 0
      %1395 = vmatprep.subr.bf16.mxu0 0
      %1396 = vmatpush1.bf16.msra.mxu0 0
      %1397 = vmatprep.mubr.bf16.mxu0 0
      %1398 = vmatmul.mubr.bf16.gmra.mrb[0].mxu0 %v1360
      %v1399 = vpop.f32.mrb[0].mxu0
      %v1400 = vadd.f32 0.0, %v1399
      %v1401 = vpop.f32.mrb[0].mxu0
      %v1402 = vadd.f32 0.0, %v1401
      %v1403 = vpop.f32.mrb[0].mxu0
      %v1404 = vadd.f32 0.0, %v1403
      %v1405 = vpop.f32.mrb[0].mxu0
      %v1406 = vadd.f32 0.0, %v1405
      %1407 = vmatprep.mubr.bf16.mxu0 0
      %1408 = vmatmul.mubr.bf16.gmra.mrb[0].mxu0 %v1363
      %v1409 = vpop.f32.mrb[0].mxu0
      %v1410 = vadd.f32 0.0, %v1409
      %v1411 = vpop.f32.mrb[0].mxu0
      %v1412 = vadd.f32 0.0, %v1411
      %v1413 = vpop.f32.mrb[0].mxu0
      %v1414 = vadd.f32 0.0, %v1413
      %v1415 = vpop.f32.mrb[0].mxu0
      %v1416 = vadd.f32 0.0, %v1415
      %1417 = vdwg.mxu0
      %v1418 = vadd.f32 %v1322, %v1400
      %v1419 = vadd.f32 %v1324, %v1402
      %v1420 = vadd.f32 %v1326, %v1404
      %v1421 = vadd.f32 %v1328, %v1406
      %v1422 = vadd.f32 %v1332, %v1410
      %v1423 = vadd.f32 %v1334, %v1412
      %v1424 = vadd.f32 %v1336, %v1414
      %v1425 = vadd.f32 %v1338, %v1416
      %v1426 = vld [vmem:[%s9] sm:$0xff]
      %v1427 = vld [vmem:[%s9 + $0x8] sm:$0xff]
      %v1428 = vld [vmem:[%s9 + $0x10] sm:$0xff]
      %v1429 = vld [vmem:[%s9 + $0x18] sm:$0xff]
      %1431 = vset.pattern.permute.xlu0 0
      %1432 = vperm.xlu0 %1431, %v1426
      %v1433 = vpop.permute.xlu0 %1432
      %1436 = vset.pattern.permute.xlu0 0
      %1437 = vperm.xlu0 %1436, %v1427
      %v1438 = vpop.permute.xlu0 %1437
      %1441 = vset.pattern.permute.xlu0 0
      %1442 = vperm.xlu0 %1441, %v1428
      %v1443 = vpop.permute.xlu0 %1442
      %1446 = vset.pattern.permute.xlu0 0
      %1447 = vperm.xlu0 %1446, %v1429
      %v1448 = vpop.permute.xlu0 %1447
      %v1450 = vadd.f32 %v1418, %v1433
      %v1451 = vadd.f32 %v1419, %v1433
      %v1452 = vadd.f32 %v1420, %v1438
      %v1453 = vadd.f32 %v1421, %v1438
      %v1454 = vadd.f32 %v1422, %v1443
      %v1455 = vadd.f32 %v1423, %v1443
      %v1456 = vadd.f32 %v1424, %v1448
      %v1457 = vadd.f32 %v1425, %v1448
      %v1458 = vmax.f32 %v1450, 0.0
      %v1459 = vmax.f32 %v1451, 0.0
      %v1460 = vmax.f32 %v1452, 0.0
      %v1461 = vmax.f32 %v1453, 0.0
      %v1462 = vmax.f32 %v1454, 0.0
      %v1463 = vmax.f32 %v1455, 0.0
      %v1464 = vmax.f32 %v1456, 0.0
      %v1465 = vmax.f32 %v1457, 0.0
      %v1466 = vld [vmem:[%s10] sm:$0xf]
      %v1467 = vld [vmem:[%s10 + $0x4] sm:$0xf]
      %v1468 = vld [vmem:[%s717] sm:$0xff]
      %v1471 = vunpack.c.l.b16 %v1466
      %v1472 = vunpack.c.l.b16 %v1467
      %v1473 = vpack.c.b16 %v1472, %v1471
      %v1475 = vunpack.c.l.b16 %v1468
      %v1476 = vunpack.c.h.b16 %v1468
      %v1477 = vpack.c.b16 %v1475, %v1475
      %v1478 = vpack.c.b16 %v1476, %v1476
      %vm1479 = vcmask 64512
      %v1481 = vsel %vm1479, %v1473, 0
      %vm1483 = vcmask 1043456
      %v1485 = vsel %vm1483, %v1477, 0
      %v1488 = vsel %vm1483, %v1478, 0
      %1490 = vmatprep.subr.bf16.mxu0 %v1488
      %1491 = vmatpush1.bf16.msra.mxu0 %v1485
      %1492 = vmatprep.subr.bf16.mxu0 0
      %1493 = vmatpush1.bf16.msra.mxu0 0
      %1494 = vmatprep.subr.bf16.mxu0 0
      %1495 = vmatpush1.bf16.msra.mxu0 0
      %1496 = vmatprep.subr.bf16.mxu0 0
      %1497 = vmatpush1.bf16.msra.mxu0 0
      %1498 = vmatprep.subr.bf16.mxu0 0
      %1499 = vmatpush1.bf16.msra.mxu0 0
      %1500 = vmatprep.subr.bf16.mxu0 0
      %1501 = vmatpush1.bf16.msra.mxu0 0
      %1502 = vmatprep.subr.bf16.mxu0 0
      %1503 = vmatpush1.bf16.msra.mxu0 0
      %1504 = vmatprep.subr.bf16.mxu0 0
      %1505 = vmatpush1.bf16.msra.mxu0 0
      %1506 = vmatprep.subr.bf16.mxu0 0
      %1507 = vmatpush1.bf16.msra.mxu0 0
      %1508 = vmatprep.subr.bf16.mxu0 0
      %1509 = vmatpush1.bf16.msra.mxu0 0
      %1510 = vmatprep.subr.bf16.mxu0 0
      %1511 = vmatpush1.bf16.msra.mxu0 0
      %1512 = vmatprep.subr.bf16.mxu0 0
      %1513 = vmatpush1.bf16.msra.mxu0 0
      %1514 = vmatprep.subr.bf16.mxu0 0
      %1515 = vmatpush1.bf16.msra.mxu0 0
      %1516 = vmatprep.subr.bf16.mxu0 0
      %1517 = vmatpush1.bf16.msra.mxu0 0
      %1518 = vmatprep.subr.bf16.mxu0 0
      %1519 = vmatpush1.bf16.msra.mxu0 0
      %1520 = vmatprep.subr.bf16.mxu0 0
      %1521 = vmatpush1.bf16.msra.mxu0 0
      %1522 = vmatprep.mubr.bf16.mxu0 0
      %1523 = vmatmul.mubr.bf16.gmra.mrb[0].mxu0 %v1481
      %v1524 = vpop.f32.mrb[0].mxu0
      %v1525 = vadd.f32 0.0, %v1524
      %v1526 = vpop.f32.mrb[0].mxu0
      %v1527 = vadd.f32 0.0, %v1526
      %v1528 = vpop.f32.mrb[0].mxu0
      %v1529 = vadd.f32 0.0, %v1528
      %v1530 = vpop.f32.mrb[0].mxu0
      %v1531 = vadd.f32 0.0, %v1530
      %1532 = vdwg.mxu0
      %v1533 = vld [vmem:[%s723] sm:$0xff]
      %v1534 = vunpack.c.l.bf16 %v1533
      %v1535 = vunpack.c.h.bf16 %v1533
      %1536 = vrot.lane.b32.xlu0 %v1534, 1
      %v1537 = vpop.permute.xlu0 %1536
      %1538 = vrot.lane.b32.xlu0 %v1535, 1
      %v1539 = vpop.permute.xlu0 %1538
      %v1540 = vsel %vm1112, %v1537, %v1539
      %v1541 = vsel %vm1112, %v1539, %v1537
      %v1542 = vmul.f32 %v1541, %v1125
      %v1543 = vmul.f32 %v1540, %v1129
      %1544 = vrot.lane.b32.xlu0 %v1534, 127
      %v1545 = vpop.permute.xlu0 %1544
      %1546 = vrot.lane.b32.xlu0 %v1535, 127
      %v1547 = vpop.permute.xlu0 %1546
      %v1548 = vsel %vm1156, %v1545, %v1547
      %v1549 = vsel %vm1156, %v1547, %v1545
      %v1550 = vmul.f32 %v1548, %v1169
      %v1551 = vmul.f32 %v1549, %v1173
      %v1552 = vld [vmem:[%s11] sm:$0xf]
      %v1553 = vld [vmem:[%s11 + $0x4] sm:$0xf]
      %v1554 = vpack.c.bf16 %v1542, %v1542
      %v1555 = vpack.c.bf16 %v1543, %v1543
      %s1556 = scalar_lea.vmem %s11, 8
      %v1557 = vld [vmem:[%s1556] sm:$0xf]
      %v1558 = vld [vmem:[%s1556 + $0x4] sm:$0xf]
      %v1561 = vunpack.c.l.b16 %v1557
      %v1562 = vunpack.c.l.b16 %v1558
      %v1563 = vpack.c.b16 %v1562, %v1561
      %v1565 = vunpack.c.l.b16 %v1533
      %v1566 = vunpack.c.h.b16 %v1533
      %v1567 = vpack.c.b16 %v1565, %v1565
      %v1568 = vpack.c.b16 %v1566, %v1566
      %v1570 = vsel %vm1479, %v1563, 0
      %v1573 = vsel %vm1483, %v1567, 0
      %v1576 = vsel %vm1483, %v1568, 0
      %1578 = vmatprep.subr.bf16.mxu0 %v1576
      %1579 = vmatpush1.bf16.msra.mxu0 %v1573
      %1580 = vmatprep.subr.bf16.mxu0 0
      %1581 = vmatpush1.bf16.msra.mxu0 0
      %1582 = vmatprep.subr.bf16.mxu0 0
      %1583 = vmatpush1.bf16.msra.mxu0 0
      %1584 = vmatprep.subr.bf16.mxu0 0
      %1585 = vmatpush1.bf16.msra.mxu0 0
      %1586 = vmatprep.subr.bf16.mxu0 0
      %1587 = vmatpush1.bf16.msra.mxu0 0
      %1588 = vmatprep.subr.bf16.mxu0 0
      %1589 = vmatpush1.bf16.msra.mxu0 0
      %1590 = vmatprep.subr.bf16.mxu0 0
      %1591 = vmatpush1.bf16.msra.mxu0 0
      %1592 = vmatprep.subr.bf16.mxu0 0
      %1593 = vmatpush1.bf16.msra.mxu0 0
      %1594 = vmatprep.subr.bf16.mxu0 0
      %1595 = vmatpush1.bf16.msra.mxu0 0
      %1596 = vmatprep.subr.bf16.mxu0 0
      %1597 = vmatpush1.bf16.msra.mxu0 0
      %1598 = vmatprep.subr.bf16.mxu0 0
      %1599 = vmatpush1.bf16.msra.mxu0 0
      %1600 = vmatprep.subr.bf16.mxu0 0
      %1601 = vmatpush1.bf16.msra.mxu0 0
      %1602 = vmatprep.subr.bf16.mxu0 0
      %1603 = vmatpush1.bf16.msra.mxu0 0
      %1604 = vmatprep.subr.bf16.mxu0 0
      %1605 = vmatpush1.bf16.msra.mxu0 0
      %1606 = vmatprep.subr.bf16.mxu0 0
      %1607 = vmatpush1.bf16.msra.mxu0 0
      %1608 = vmatprep.subr.bf16.mxu0 0
      %1609 = vmatpush1.bf16.msra.mxu0 0
      %1610 = vmatprep.mubr.bf16.mxu0 0
      %1611 = vmatmul.mubr.bf16.gmra.mrb[0].mxu0 %v1570
      %v1612 = vpop.f32.mrb[0].mxu0
      %v1613 = vadd.f32 0.0, %v1612
      %v1614 = vpop.f32.mrb[0].mxu0
      %v1615 = vadd.f32 0.0, %v1614
      %v1616 = vpop.f32.mrb[0].mxu0
      %v1617 = vadd.f32 0.0, %v1616
      %v1618 = vpop.f32.mrb[0].mxu0
      %v1619 = vadd.f32 0.0, %v1618
      %1620 = vdwg.mxu0
      %v1623 = vunpack.c.l.b16 %v1552
      %v1624 = vunpack.c.l.b16 %v1553
      %v1625 = vpack.c.b16 %v1624, %v1623
      %v1627 = vsel %vm1479, %v1625, 0
      %v1630 = vsel %vm1483, %v1554, 0
      %v1633 = vsel %vm1483, %v1555, 0
      %1635 = vmatprep.subr.bf16.mxu0 %v1633
      %1636 = vmatpush1.bf16.msra.mxu0 %v1630
      %1637 = vmatprep.subr.bf16.mxu0 0
      %1638 = vmatpush1.bf16.msra.mxu0 0
      %1639 = vmatprep.subr.bf16.mxu0 0
      %1640 = vmatpush1.bf16.msra.mxu0 0
      %1641 = vmatprep.subr.bf16.mxu0 0
      %1642 = vmatpush1.bf16.msra.mxu0 0
      %1643 = vmatprep.subr.bf16.mxu0 0
      %1644 = vmatpush1.bf16.msra.mxu0 0
      %1645 = vmatprep.subr.bf16.mxu0 0
      %1646 = vmatpush1.bf16.msra.mxu0 0
      %1647 = vmatprep.subr.bf16.mxu0 0
      %1648 = vmatpush1.bf16.msra.mxu0 0
      %1649 = vmatprep.subr.bf16.mxu0 0
      %1650 = vmatpush1.bf16.msra.mxu0 0
      %1651 = vmatprep.subr.bf16.mxu0 0
      %1652 = vmatpush1.bf16.msra.mxu0 0
      %1653 = vmatprep.subr.bf16.mxu0 0
      %1654 = vmatpush1.bf16.msra.mxu0 0
      %1655 = vmatprep.subr.bf16.mxu0 0
      %1656 = vmatpush1.bf16.msra.mxu0 0
      %1657 = vmatprep.subr.bf16.mxu0 0
      %1658 = vmatpush1.bf16.msra.mxu0 0
      %1659 = vmatprep.subr.bf16.mxu0 0
      %1660 = vmatpush1.bf16.msra.mxu0 0
      %1661 = vmatprep.subr.bf16.mxu0 0
      %1662 = vmatpush1.bf16.msra.mxu0 0
      %1663 = vmatprep.subr.bf16.mxu0 0
      %1664 = vmatpush1.bf16.msra.mxu0 0
      %1665 = vmatprep.subr.bf16.mxu0 0
      %1666 = vmatpush1.bf16.msra.mxu0 0
      %1667 = vmatprep.mubr.bf16.mxu0 0
      %1668 = vmatmul.mubr.bf16.gmra.mrb[0].mxu0 %v1627
      %v1669 = vpop.f32.mrb[0].mxu0
      %v1670 = vadd.f32 %v1613, %v1669
      %v1671 = vpop.f32.mrb[0].mxu0
      %v1672 = vadd.f32 %v1615, %v1671
      %v1673 = vpop.f32.mrb[0].mxu0
      %v1674 = vadd.f32 %v1617, %v1673
      %v1675 = vpop.f32.mrb[0].mxu0
      %v1676 = vadd.f32 %v1619, %v1675
      %1677 = vdwg.mxu0
      %s1678 = scalar_lea.vmem %s11, 16
      %v1679 = vld [vmem:[%s1678] sm:$0xf]
      %v1680 = vld [vmem:[%s1678 + $0x4] sm:$0xf]
      %v1681 = vpack.c.bf16 %v1550, %v1550
      %v1682 = vpack.c.bf16 %v1551, %v1551
      %v1685 = vunpack.c.l.b16 %v1679
      %v1686 = vunpack.c.l.b16 %v1680
      %v1687 = vpack.c.b16 %v1686, %v1685
      %v1689 = vsel %vm1479, %v1687, 0
      %v1692 = vsel %vm1483, %v1681, 0
      %v1695 = vsel %vm1483, %v1682, 0
      %1697 = vmatprep.subr.bf16.mxu0 %v1695
      %1698 = vmatpush1.bf16.msra.mxu0 %v1692
      %1699 = vmatprep.subr.bf16.mxu0 0
      %1700 = vmatpush1.bf16.msra.mxu0 0
      %1701 = vmatprep.subr.bf16.mxu0 0
      %1702 = vmatpush1.bf16.msra.mxu0 0
      %1703 = vmatprep.subr.bf16.mxu0 0
      %1704 = vmatpush1.bf16.msra.mxu0 0
      %1705 = vmatprep.subr.bf16.mxu0 0
      %1706 = vmatpush1.bf16.msra.mxu0 0
      %1707 = vmatprep.subr.bf16.mxu0 0
      %1708 = vmatpush1.bf16.msra.mxu0 0
      %1709 = vmatprep.subr.bf16.mxu0 0
      %1710 = vmatpush1.bf16.msra.mxu0 0
      %1711 = vmatprep.subr.bf16.mxu0 0
      %1712 = vmatpush1.bf16.msra.mxu0 0
      %1713 = vmatprep.subr.bf16.mxu0 0
      %1714 = vmatpush1.bf16.msra.mxu0 0
      %1715 = vmatprep.subr.bf16.mxu0 0
      %1716 = vmatpush1.bf16.msra.mxu0 0
      %1717 = vmatprep.subr.bf16.mxu0 0
      %1718 = vmatpush1.bf16.msra.mxu0 0
      %1719 = vmatprep.subr.bf16.mxu0 0
      %1720 = vmatpush1.bf16.msra.mxu0 0
      %1721 = vmatprep.subr.bf16.mxu0 0
      %1722 = vmatpush1.bf16.msra.mxu0 0
      %1723 = vmatprep.subr.bf16.mxu0 0
      %1724 = vmatpush1.bf16.msra.mxu0 0
      %1725 = vmatprep.subr.bf16.mxu0 0
      %1726 = vmatpush1.bf16.msra.mxu0 0
      %1727 = vmatprep.subr.bf16.mxu0 0
      %1728 = vmatpush1.bf16.msra.mxu0 0
      %1729 = vmatprep.mubr.bf16.mxu0 0
      %1730 = vmatmul.mubr.bf16.gmra.mrb[0].mxu0 %v1689
      %v1731 = vpop.f32.mrb[0].mxu0
      %v1732 = vadd.f32 0.0, %v1731
      %v1733 = vpop.f32.mrb[0].mxu0
      %v1734 = vadd.f32 0.0, %v1733
      %v1735 = vpop.f32.mrb[0].mxu0
      %v1736 = vadd.f32 0.0, %v1735
      %v1737 = vpop.f32.mrb[0].mxu0
      %v1738 = vadd.f32 0.0, %v1737
      %1739 = vdwg.mxu0
      %v1740 = vadd.f32 %v1670, %v1732
      %v1741 = vadd.f32 %v1672, %v1734
      %v1742 = vadd.f32 %v1674, %v1736
      %v1743 = vadd.f32 %v1676, %v1738
      %v1744 = vld [vmem:[%s12] sm:$0xf]
      %v1745 = vld [vmem:[%s12 + $0x4] sm:$0xf]
      %v1746 = vld [vmem:[%s12 + $0x8] sm:$0xf]
      %v1747 = vld [vmem:[%s12 + $0xc] sm:$0xf]
      %v1748 = vpack.c.bf16 %v1460, %v1458
      %v1749 = vpack.c.bf16 %v1461, %v1459
      %v1750 = vpack.c.bf16 %v1464, %v1462
      %v1751 = vpack.c.bf16 %v1465, %v1463
      %v1752 = vld [vmem:[%s13] sm:$0xf]
      %v1753 = vld [vmem:[%s13 + $0x4] sm:$0xf]
      %v1754 = vld [vmem:[%s13 + $0x8] sm:$0xf]
      %v1755 = vld [vmem:[%s13 + $0xc] sm:$0xf]
      %v1756 = vpack.c.bf16 %v1529, %v1525
      %v1757 = vpack.c.bf16 %v1531, %v1527
      %v1762 = vunpack.c.l.b16 %v1752
      %v1763 = vunpack.c.l.b16 %v1753
      %v1764 = vunpack.c.l.b16 %v1754
      %v1765 = vunpack.c.l.b16 %v1755
      %v1766 = vpack.c.b16 %v1763, %v1762
      %v1767 = vpack.c.b16 %v1765, %v1764
      %vm1768 = vcmask 130048
      %v1770 = vsel %vm1768, %v1766, 0
      %v1773 = vsel %vm1768, %v1767, 0
      %1775 = vmatprep.subr.bf16.mxu0 %v1757
      %1776 = vmatpush1.bf16.msra.mxu0 %v1756
      %1777 = vmatprep.subr.bf16.mxu0 0
      %1778 = vmatpush1.bf16.msra.mxu0 0
      %1779 = vmatprep.subr.bf16.mxu0 0
      %1780 = vmatpush1.bf16.msra.mxu0 0
      %1781 = vmatprep.subr.bf16.mxu0 0
      %1782 = vmatpush1.bf16.msra.mxu0 0
      %1783 = vmatprep.subr.bf16.mxu0 0
      %1784 = vmatpush1.bf16.msra.mxu0 0
      %1785 = vmatprep.subr.bf16.mxu0 0
      %1786 = vmatpush1.bf16.msra.mxu0 0
      %1787 = vmatprep.subr.bf16.mxu0 0
      %1788 = vmatpush1.bf16.msra.mxu0 0
      %1789 = vmatprep.subr.bf16.mxu0 0
      %1790 = vmatpush1.bf16.msra.mxu0 0
      %1791 = vmatprep.subr.bf16.mxu0 0
      %1792 = vmatpush1.bf16.msra.mxu0 0
      %1793 = vmatprep.subr.bf16.mxu0 0
      %1794 = vmatpush1.bf16.msra.mxu0 0
      %1795 = vmatprep.subr.bf16.mxu0 0
      %1796 = vmatpush1.bf16.msra.mxu0 0
      %1797 = vmatprep.subr.bf16.mxu0 0
      %1798 = vmatpush1.bf16.msra.mxu0 0
      %1799 = vmatprep.subr.bf16.mxu0 0
      %1800 = vmatpush1.bf16.msra.mxu0 0
      %1801 = vmatprep.subr.bf16.mxu0 0
      %1802 = vmatpush1.bf16.msra.mxu0 0
      %1803 = vmatprep.subr.bf16.mxu0 0
      %1804 = vmatpush1.bf16.msra.mxu0 0
      %1805 = vmatprep.subr.bf16.mxu0 0
      %1806 = vmatpush1.bf16.msra.mxu0 0
      %1807 = vmatprep.mubr.bf16.mxu0 0
      %1808 = vmatmul.mubr.bf16.gmra.mrb[0].mxu0 %v1770
      %v1809 = vpop.f32.mrb[0].mxu0
      %v1810 = vadd.f32 0.0, %v1809
      %v1811 = vpop.f32.mrb[0].mxu0
      %v1812 = vadd.f32 0.0, %v1811
      %v1813 = vpop.f32.mrb[0].mxu0
      %v1814 = vadd.f32 0.0, %v1813
      %v1815 = vpop.f32.mrb[0].mxu0
      %v1816 = vadd.f32 0.0, %v1815
      %1817 = vmatprep.mubr.bf16.mxu0 0
      %1818 = vmatmul.mubr.bf16.gmra.mrb[0].mxu0 %v1773
      %v1819 = vpop.f32.mrb[0].mxu0
      %v1820 = vadd.f32 0.0, %v1819
      %v1821 = vpop.f32.mrb[0].mxu0
      %v1822 = vadd.f32 0.0, %v1821
      %v1823 = vpop.f32.mrb[0].mxu0
      %v1824 = vadd.f32 0.0, %v1823
      %v1825 = vpop.f32.mrb[0].mxu0
      %v1826 = vadd.f32 0.0, %v1825
      %1827 = vdwg.mxu0
      %v1832 = vunpack.c.l.b16 %v1744
      %v1833 = vunpack.c.l.b16 %v1745
      %v1834 = vunpack.c.l.b16 %v1746
      %v1835 = vunpack.c.l.b16 %v1747
      %v1836 = vpack.c.b16 %v1833, %v1832
      %v1837 = vpack.c.b16 %v1835, %v1834
      %v1839 = vsel %vm1211, %v1836, 0
      %v1842 = vsel %vm1211, %v1837, 0
      %1844 = vmatprep.subr.bf16.mxu0 %v1749
      %1845 = vmatpush1.bf16.msra.mxu0 %v1748
      %1846 = vmatprep.subr.bf16.mxu0 %v1751
      %1847 = vmatpush1.bf16.msra.mxu0 %v1750
      %1848 = vmatprep.subr.bf16.mxu0 0
      %1849 = vmatpush1.bf16.msra.mxu0 0
      %1850 = vmatprep.subr.bf16.mxu0 0
      %1851 = vmatpush1.bf16.msra.mxu0 0
      %1852 = vmatprep.subr.bf16.mxu0 0
      %1853 = vmatpush1.bf16.msra.mxu0 0
      %1854 = vmatprep.subr.bf16.mxu0 0
      %1855 = vmatpush1.bf16.msra.mxu0 0
      %1856 = vmatprep.subr.bf16.mxu0 0
      %1857 = vmatpush1.bf16.msra.mxu0 0
      %1858 = vmatprep.subr.bf16.mxu0 0
      %1859 = vmatpush1.bf16.msra.mxu0 0
      %1860 = vmatprep.subr.bf16.mxu0 0
      %1861 = vmatpush1.bf16.msra.mxu0 0
      %1862 = vmatprep.subr.bf16.mxu0 0
      %1863 = vmatpush1.bf16.msra.mxu0 0
      %1864 = vmatprep.subr.bf16.mxu0 0
      %1865 = vmatpush1.bf16.msra.mxu0 0
      %1866 = vmatprep.subr.bf16.mxu0 0
      %1867 = vmatpush1.bf16.msra.mxu0 0
      %1868 = vmatprep.subr.bf16.mxu0 0
      %1869 = vmatpush1.bf16.msra.mxu0 0
      %1870 = vmatprep.subr.bf16.mxu0 0
      %1871 = vmatpush1.bf16.msra.mxu0 0
      %1872 = vmatprep.subr.bf16.mxu0 0
      %1873 = vmatpush1.bf16.msra.mxu0 0
      %1874 = vmatprep.subr.bf16.mxu0 0
      %1875 = vmatpush1.bf16.msra.mxu0 0
      %1876 = vmatprep.mubr.bf16.mxu0 0
      %1877 = vmatmul.mubr.bf16.gmra.mrb[0].mxu0 %v1839
      %v1878 = vpop.f32.mrb[0].mxu0
      %v1879 = vadd.f32 %v1810, %v1878
      %v1880 = vpop.f32.mrb[0].mxu0
      %v1881 = vadd.f32 %v1812, %v1880
      %v1882 = vpop.f32.mrb[0].mxu0
      %v1883 = vadd.f32 %v1814, %v1882
      %v1884 = vpop.f32.mrb[0].mxu0
      %v1885 = vadd.f32 %v1816, %v1884
      %1886 = vmatprep.mubr.bf16.mxu0 0
      %1887 = vmatmul.mubr.bf16.gmra.mrb[0].mxu0 %v1842
      %v1888 = vpop.f32.mrb[0].mxu0
      %v1889 = vadd.f32 %v1820, %v1888
      %v1890 = vpop.f32.mrb[0].mxu0
      %v1891 = vadd.f32 %v1822, %v1890
      %v1892 = vpop.f32.mrb[0].mxu0
      %v1893 = vadd.f32 %v1824, %v1892
      %v1894 = vpop.f32.mrb[0].mxu0
      %v1895 = vadd.f32 %v1826, %v1894
      %1896 = vdwg.mxu0
      %v1897 = vld [vmem:[%s14] sm:$0xf]
      %v1898 = vld [vmem:[%s14 + $0x4] sm:$0xf]
      %v1899 = vld [vmem:[%s14 + $0x8] sm:$0xf]
      %v1900 = vld [vmem:[%s14 + $0xc] sm:$0xf]
      %v1901 = vpack.c.bf16 %v1742, %v1740
      %v1902 = vpack.c.bf16 %v1743, %v1741
      %v1907 = vunpack.c.l.b16 %v1897
      %v1908 = vunpack.c.l.b16 %v1898
      %v1909 = vunpack.c.l.b16 %v1899
      %v1910 = vunpack.c.l.b16 %v1900
      %v1911 = vpack.c.b16 %v1908, %v1907
      %v1912 = vpack.c.b16 %v1910, %v1909
      %v1914 = vsel %vm1768, %v1911, 0
      %v1917 = vsel %vm1768, %v1912, 0
      %1919 = vmatprep.subr.bf16.mxu0 %v1902
      %1920 = vmatpush1.bf16.msra.mxu0 %v1901
      %1921 = vmatprep.subr.bf16.mxu0 0
      %1922 = vmatpush1.bf16.msra.mxu0 0
      %1923 = vmatprep.subr.bf16.mxu0 0
      %1924 = vmatpush1.bf16.msra.mxu0 0
      %1925 = vmatprep.subr.bf16.mxu0 0
      %1926 = vmatpush1.bf16.msra.mxu0 0
      %1927 = vmatprep.subr.bf16.mxu0 0
      %1928 = vmatpush1.bf16.msra.mxu0 0
      %1929 = vmatprep.subr.bf16.mxu0 0
      %1930 = vmatpush1.bf16.msra.mxu0 0
      %1931 = vmatprep.subr.bf16.mxu0 0
      %1932 = vmatpush1.bf16.msra.mxu0 0
      %1933 = vmatprep.subr.bf16.mxu0 0
      %1934 = vmatpush1.bf16.msra.mxu0 0
      %1935 = vmatprep.subr.bf16.mxu0 0
      %1936 = vmatpush1.bf16.msra.mxu0 0
      %1937 = vmatprep.subr.bf16.mxu0 0
      %1938 = vmatpush1.bf16.msra.mxu0 0
      %1939 = vmatprep.subr.bf16.mxu0 0
      %1940 = vmatpush1.bf16.msra.mxu0 0
      %1941 = vmatprep.subr.bf16.mxu0 0
      %1942 = vmatpush1.bf16.msra.mxu0 0
      %1943 = vmatprep.subr.bf16.mxu0 0
      %1944 = vmatpush1.bf16.msra.mxu0 0
      %1945 = vmatprep.subr.bf16.mxu0 0
      %1946 = vmatpush1.bf16.msra.mxu0 0
      %1947 = vmatprep.subr.bf16.mxu0 0
      %1948 = vmatpush1.bf16.msra.mxu0 0
      %1949 = vmatprep.subr.bf16.mxu0 0
      %1950 = vmatpush1.bf16.msra.mxu0 0
      %1951 = vmatprep.mubr.bf16.mxu0 0
      %1952 = vmatmul.mubr.bf16.gmra.mrb[0].mxu0 %v1914
      %v1953 = vpop.f32.mrb[0].mxu0
      %v1954 = vadd.f32 0.0, %v1953
      %v1955 = vpop.f32.mrb[0].mxu0
      %v1956 = vadd.f32 0.0, %v1955
      %v1957 = vpop.f32.mrb[0].mxu0
      %v1958 = vadd.f32 0.0, %v1957
      %v1959 = vpop.f32.mrb[0].mxu0
      %v1960 = vadd.f32 0.0, %v1959
      %1961 = vmatprep.mubr.bf16.mxu0 0
      %1962 = vmatmul.mubr.bf16.gmra.mrb[0].mxu0 %v1917
      %v1963 = vpop.f32.mrb[0].mxu0
      %v1964 = vadd.f32 0.0, %v1963
      %v1965 = vpop.f32.mrb[0].mxu0
      %v1966 = vadd.f32 0.0, %v1965
      %v1967 = vpop.f32.mrb[0].mxu0
      %v1968 = vadd.f32 0.0, %v1967
      %v1969 = vpop.f32.mrb[0].mxu0
      %v1970 = vadd.f32 0.0, %v1969
      %1971 = vdwg.mxu0
      %v1972 = vadd.f32 %v1879, %v1954
      %v1973 = vadd.f32 %v1881, %v1956
      %v1974 = vadd.f32 %v1883, %v1958
      %v1975 = vadd.f32 %v1885, %v1960
      %v1976 = vadd.f32 %v1889, %v1964
      %v1977 = vadd.f32 %v1891, %v1966
      %v1978 = vadd.f32 %v1893, %v1968
      %v1979 = vadd.f32 %v1895, %v1970
      %v1980 = vld [vmem:[%s15] sm:$0xff]
      %v1981 = vld [vmem:[%s15 + $0x8] sm:$0xff]
      %v1982 = vld [vmem:[%s15 + $0x10] sm:$0xff]
      %v1983 = vld [vmem:[%s15 + $0x18] sm:$0xff]
      %1985 = vset.pattern.permute.xlu0 0
      %1986 = vperm.xlu0 %1985, %v1980
      %v1987 = vpop.permute.xlu0 %1986
      %1990 = vset.pattern.permute.xlu0 0
      %1991 = vperm.xlu0 %1990, %v1981
      %v1992 = vpop.permute.xlu0 %1991
      %1995 = vset.pattern.permute.xlu0 0
      %1996 = vperm.xlu0 %1995, %v1982
      %v1997 = vpop.permute.xlu0 %1996
      %2000 = vset.pattern.permute.xlu0 0
      %2001 = vperm.xlu0 %2000, %v1983
      %v2002 = vpop.permute.xlu0 %2001
      %v2004 = vadd.f32 %v1972, %v1987
      %v2005 = vadd.f32 %v1973, %v1987
      %v2006 = vadd.f32 %v1974, %v1992
      %v2007 = vadd.f32 %v1975, %v1992
      %v2008 = vadd.f32 %v1976, %v1997
      %v2009 = vadd.f32 %v1977, %v1997
      %v2010 = vadd.f32 %v1978, %v2002
      %v2011 = vadd.f32 %v1979, %v2002
      %v2012 = vpack.c.bf16 %v2006, %v2004
      %v2013 = vpack.c.bf16 %v2007, %v2005
      %v2014 = vpack.c.bf16 %v2010, %v2008
      %v2015 = vpack.c.bf16 %v2011, %v2009
      %2016 = vmatprep.subr.bf16.mxu0 %v875
      %2017 = vmatpush1.bf16.msra.mxu0 %v874
      %2018 = vmatprep.subr.bf16.mxu0 %v877
      %2019 = vmatpush1.bf16.msra.mxu0 %v876
      %2020 = vmatprep.subr.bf16.mxu0 %v879
      %2021 = vmatpush1.bf16.msra.mxu0 %v878
      %2022 = vmatprep.subr.bf16.mxu0 %v881
      %2023 = vmatpush1.bf16.msra.mxu0 %v880
      %2024 = vmatprep.subr.bf16.mxu0 %v883
      %2025 = vmatpush1.bf16.msra.mxu0 %v882
      %2026 = vmatprep.subr.bf16.mxu0 %v885
      %2027 = vmatpush1.bf16.msra.mxu0 %v884
      %2028 = vmatprep.subr.bf16.mxu0 %v887
      %2029 = vmatpush1.bf16.msra.mxu0 %v886
      %2030 = vmatprep.subr.bf16.mxu0 %v889
      %2031 = vmatpush1.bf16.msra.mxu0 %v888
      %2032 = vmatprep.subr.bf16.mxu0 %v891
      %2033 = vmatpush1.bf16.msra.mxu0 %v890
      %2034 = vmatprep.subr.bf16.mxu0 %v893
      %2035 = vmatpush1.bf16.msra.mxu0 %v892
      %2036 = vmatprep.subr.bf16.mxu0 %v895
      %2037 = vmatpush1.bf16.msra.mxu0 %v894
      %2038 = vmatprep.subr.bf16.mxu0 %v897
      %2039 = vmatpush1.bf16.msra.mxu0 %v896
      %2040 = vmatprep.subr.bf16.mxu0 %v899
      %2041 = vmatpush1.bf16.msra.mxu0 %v898
      %2042 = vmatprep.subr.bf16.mxu0 %v901
      %2043 = vmatpush1.bf16.msra.mxu0 %v900
      %2044 = vmatprep.subr.bf16.mxu0 %v903
      %2045 = vmatpush1.bf16.msra.mxu0 %v902
      %2046 = vmatprep.subr.bf16.mxu0 %v905
      %2047 = vmatpush1.bf16.msra.mxu0 %v904
      %2048 = vmatprep.mubr.bf16.mxu0 %v2013
      %2049 = vmatmul.mubr.bf16.gmra.mrb[0].mxu0 %v2012
      %v2050 = vpop.f32.mrb[0].mxu0
      %v2051 = vadd.f32 0.0, %v2050
      %v2052 = vpop.f32.mrb[0].mxu0
      %v2053 = vadd.f32 0.0, %v2052
      %v2054 = vpop.f32.mrb[0].mxu0
      %v2055 = vadd.f32 0.0, %v2054
      %v2056 = vpop.f32.mrb[0].mxu0
      %v2057 = vadd.f32 0.0, %v2056
      %2058 = vmatprep.mubr.bf16.mxu0 %v2015
      %2059 = vmatmul.mubr.bf16.gmra.mrb[0].mxu0 %v2014
      %v2060 = vpop.f32.mrb[0].mxu0
      %v2061 = vadd.f32 0.0, %v2060
      %v2062 = vpop.f32.mrb[0].mxu0
      %v2063 = vadd.f32 0.0, %v2062
      %v2064 = vpop.f32.mrb[0].mxu0
      %v2065 = vadd.f32 0.0, %v2064
      %v2066 = vpop.f32.mrb[0].mxu0
      %v2067 = vadd.f32 0.0, %v2066
      %2068 = vdwg.mxu0
      %v2069 = vld [vmem:[%s16] sm:$0xf]
      %v2070 = vld [vmem:[%s16 + $0x4] sm:$0xf]
      %v2071 = vld [vmem:[%s16 + $0x8] sm:$0xf]
      %v2072 = vld [vmem:[%s16 + $0xc] sm:$0xf]
      %v2073 = vpack.c.bf16 %v2055, %v2051
      %v2074 = vpack.c.bf16 %v2057, %v2053
      %v2075 = vpack.c.bf16 %v2065, %v2061
      %v2076 = vpack.c.bf16 %v2067, %v2063
      %v2077 = vld [vmem:[%s17] sm:$0xff]
      %v2078 = vld [vmem:[%s17 + $0x8] sm:$0xff]
      %v2079 = vld [vmem:[%s17 + $0x10] sm:$0xff]
      %v2080 = vld [vmem:[%s17 + $0x18] sm:$0xff]
      %2082 = vset.pattern.permute.xlu0 0
      %2083 = vperm.xlu0 %2082, %v2077
      %v2084 = vpop.permute.xlu0 %2083
      %2087 = vset.pattern.permute.xlu0 0
      %2088 = vperm.xlu0 %2087, %v2078
      %v2089 = vpop.permute.xlu0 %2088
      %2092 = vset.pattern.permute.xlu0 0
      %2093 = vperm.xlu0 %2092, %v2079
      %v2094 = vpop.permute.xlu0 %2093
      %2097 = vset.pattern.permute.xlu0 0
      %2098 = vperm.xlu0 %2097, %v2080
      %v2099 = vpop.permute.xlu0 %2098
      %v2105 = vunpack.c.l.b16 %v2069
      %v2106 = vunpack.c.l.b16 %v2070
      %v2107 = vunpack.c.l.b16 %v2071
      %v2108 = vunpack.c.l.b16 %v2072
      %v2109 = vpack.c.b16 %v2106, %v2105
      %v2110 = vpack.c.b16 %v2108, %v2107
      %v2112 = vsel %vm1211, %v2109, 0
      %v2115 = vsel %vm1211, %v2110, 0
      %2117 = vmatprep.subr.bf16.mxu0 %v2074
      %2118 = vmatpush1.bf16.msra.mxu0 %v2073
      %2119 = vmatprep.subr.bf16.mxu0 %v2076
      %2120 = vmatpush1.bf16.msra.mxu0 %v2075
      %2121 = vmatprep.subr.bf16.mxu0 0
      %2122 = vmatpush1.bf16.msra.mxu0 0
      %2123 = vmatprep.subr.bf16.mxu0 0
      %2124 = vmatpush1.bf16.msra.mxu0 0
      %2125 = vmatprep.subr.bf16.mxu0 0
      %2126 = vmatpush1.bf16.msra.mxu0 0
      %2127 = vmatprep.subr.bf16.mxu0 0
      %2128 = vmatpush1.bf16.msra.mxu0 0
      %2129 = vmatprep.subr.bf16.mxu0 0
      %2130 = vmatpush1.bf16.msra.mxu0 0
      %2131 = vmatprep.subr.bf16.mxu0 0
      %2132 = vmatpush1.bf16.msra.mxu0 0
      %2133 = vmatprep.subr.bf16.mxu0 0
      %2134 = vmatpush1.bf16.msra.mxu0 0
      %2135 = vmatprep.subr.bf16.mxu0 0
      %2136 = vmatpush1.bf16.msra.mxu0 0
      %2137 = vmatprep.subr.bf16.mxu0 0
      %2138 = vmatpush1.bf16.msra.mxu0 0
      %2139 = vmatprep.subr.bf16.mxu0 0
      %2140 = vmatpush1.bf16.msra.mxu0 0
      %2141 = vmatprep.subr.bf16.mxu0 0
      %2142 = vmatpush1.bf16.msra.mxu0 0
      %2143 = vmatprep.subr.bf16.mxu0 0
      %2144 = vmatpush1.bf16.msra.mxu0 0
      %2145 = vmatprep.subr.bf16.mxu0 0
      %2146 = vmatpush1.bf16.msra.mxu0 0
      %2147 = vmatprep.subr.bf16.mxu0 0
      %2148 = vmatpush1.bf16.msra.mxu0 0
      %2149 = vmatprep.mubr.bf16.mxu0 0
      %2150 = vmatmul.mubr.bf16.gmra.mrb[0].mxu0 %v2112
      %v2151 = vpop.f32.mrb[0].mxu0
      %v2152 = vadd.f32 %v2084, %v2151
      %v2153 = vpop.f32.mrb[0].mxu0
      %v2154 = vadd.f32 %v2084, %v2153
      %v2155 = vpop.f32.mrb[0].mxu0
      %v2156 = vadd.f32 %v2089, %v2155
      %v2157 = vpop.f32.mrb[0].mxu0
      %v2158 = vadd.f32 %v2089, %v2157
      %2159 = vmatprep.mubr.bf16.mxu0 0
      %2160 = vmatmul.mubr.bf16.gmra.mrb[0].mxu0 %v2115
      %v2161 = vpop.f32.mrb[0].mxu0
      %v2162 = vadd.f32 %v2094, %v2161
      %v2163 = vpop.f32.mrb[0].mxu0
      %v2164 = vadd.f32 %v2094, %v2163
      %v2165 = vpop.f32.mrb[0].mxu0
      %v2166 = vadd.f32 %v2099, %v2165
      %v2167 = vpop.f32.mrb[0].mxu0
      %v2168 = vadd.f32 %v2099, %v2167
      %2169 = vdwg.mxu0
      %v2170 = vmax.f32 %v2152, 0.0
      %v2171 = vmax.f32 %v2154, 0.0
      %v2172 = vmax.f32 %v2156, 0.0
      %v2173 = vmax.f32 %v2158, 0.0
      %v2174 = vmax.f32 %v2162, 0.0
      %v2175 = vmax.f32 %v2164, 0.0
      %v2176 = vmax.f32 %v2166, 0.0
      %v2177 = vmax.f32 %v2168, 0.0
      %2178 = vrot.lane.b32.xlu0 %v2170, 1
      %v2179 = vpop.permute.xlu0 %2178
      %2180 = vrot.lane.b32.xlu0 %v2172, 1
      %v2181 = vpop.permute.xlu0 %2180
      %2182 = vrot.lane.b32.xlu0 %v2174, 1
      %v2183 = vpop.permute.xlu0 %2182
      %2184 = vrot.lane.b32.xlu0 %v2176, 1
      %v2185 = vpop.permute.xlu0 %2184
      %2186 = vrot.lane.b32.xlu0 %v2171, 1
      %v2187 = vpop.permute.xlu0 %2186
      %2188 = vrot.lane.b32.xlu0 %v2173, 1
      %v2189 = vpop.permute.xlu0 %2188
      %2190 = vrot.lane.b32.xlu0 %v2175, 1
      %v2191 = vpop.permute.xlu0 %2190
      %2192 = vrot.lane.b32.xlu0 %v2177, 1
      %v2193 = vpop.permute.xlu0 %2192
      %v2194 = vsel %vm1112, %v2179, %v2187
      %v2195 = vsel %vm1112, %v2181, %v2189
      %v2196 = vsel %vm1112, %v2183, %v2191
      %v2197 = vsel %vm1112, %v2185, %v2193
      %v2198 = vsel %vm1112, %v2187, %v2179
      %v2199 = vsel %vm1112, %v2189, %v2181
      %v2200 = vsel %vm1112, %v2191, %v2183
      %v2201 = vsel %vm1112, %v2193, %v2185
      %v2202 = vmul.f32 %v2198, %v1125
      %v2203 = vmul.f32 %v2194, %v1129
      %v2204 = vmul.f32 %v2199, %v1125
      %v2205 = vmul.f32 %v2195, %v1129
      %v2206 = vmul.f32 %v2200, %v1125
      %v2207 = vmul.f32 %v2196, %v1129
      %v2208 = vmul.f32 %v2201, %v1125
      %v2209 = vmul.f32 %v2197, %v1129
      %2210 = vrot.lane.b32.xlu0 %v2170, 127
      %v2211 = vpop.permute.xlu0 %2210
      %2212 = vrot.lane.b32.xlu0 %v2172, 127
      %v2213 = vpop.permute.xlu0 %2212
      %2214 = vrot.lane.b32.xlu0 %v2174, 127
      %v2215 = vpop.permute.xlu0 %2214
      %2216 = vrot.lane.b32.xlu0 %v2176, 127
      %v2217 = vpop.permute.xlu0 %2216
      %2218 = vrot.lane.b32.xlu0 %v2171, 127
      %v2219 = vpop.permute.xlu0 %2218
      %2220 = vrot.lane.b32.xlu0 %v2173, 127
      %v2221 = vpop.permute.xlu0 %2220
      %2222 = vrot.lane.b32.xlu0 %v2175, 127
      %v2223 = vpop.permute.xlu0 %2222
      %2224 = vrot.lane.b32.xlu0 %v2177, 127
      %v2225 = vpop.permute.xlu0 %2224
      %v2226 = vsel %vm1156, %v2211, %v2219
      %v2227 = vsel %vm1156, %v2213, %v2221
      %v2228 = vsel %vm1156, %v2215, %v2223
      %v2229 = vsel %vm1156, %v2217, %v2225
      %v2230 = vsel %vm1156, %v2219, %v2211
      %v2231 = vsel %vm1156, %v2221, %v2213
      %v2232 = vsel %vm1156, %v2223, %v2215
      %v2233 = vsel %vm1156, %v2225, %v2217
      %v2234 = vmul.f32 %v2226, %v1169
      %v2235 = vmul.f32 %v2230, %v1173
      %v2236 = vmul.f32 %v2227, %v1169
      %v2237 = vmul.f32 %v2231, %v1173
      %v2238 = vmul.f32 %v2228, %v1169
      %v2239 = vmul.f32 %v2232, %v1173
      %v2240 = vmul.f32 %v2229, %v1169
      %v2241 = vmul.f32 %v2233, %v1173
      %v2242 = vld [vmem:[%s18] sm:$0xf]
      %v2243 = vld [vmem:[%s18 + $0x4] sm:$0xf]
      %v2244 = vld [vmem:[%s18 + $0x8] sm:$0xf]
      %v2245 = vld [vmem:[%s18 + $0xc] sm:$0xf]
      %v2246 = vpack.c.bf16 %v2204, %v2202
      %v2247 = vpack.c.bf16 %v2205, %v2203
      %v2248 = vpack.c.bf16 %v2208, %v2206
      %v2249 = vpack.c.bf16 %v2209, %v2207
      %s2250 = scalar_lea.vmem %s18, 16
      %v2251 = vld [vmem:[%s2250] sm:$0xf]
      %v2252 = vld [vmem:[%s2250 + $0x4] sm:$0xf]
      %v2253 = vld [vmem:[%s2250 + $0x8] sm:$0xf]
      %v2254 = vld [vmem:[%s2250 + $0xc] sm:$0xf]
      %v2255 = vpack.c.bf16 %v2172, %v2170
      %v2256 = vpack.c.bf16 %v2173, %v2171
      %v2257 = vpack.c.bf16 %v2176, %v2174
      %v2258 = vpack.c.bf16 %v2177, %v2175
      %v2263 = vunpack.c.l.b16 %v2251
      %v2264 = vunpack.c.l.b16 %v2252
      %v2265 = vunpack.c.l.b16 %v2253
      %v2266 = vunpack.c.l.b16 %v2254
      %v2267 = vpack.c.b16 %v2264, %v2263
      %v2268 = vpack.c.b16 %v2266, %v2265
      %v2270 = vsel %vm1211, %v2267, 0
      %v2273 = vsel %vm1211, %v2268, 0
      %2275 = vmatprep.subr.bf16.mxu0 %v2256
      %2276 = vmatpush1.bf16.msra.mxu0 %v2255
      %2277 = vmatprep.subr.bf16.mxu0 %v2258
      %2278 = vmatpush1.bf16.msra.mxu0 %v2257
      %2279 = vmatprep.subr.bf16.mxu0 0
      %2280 = vmatpush1.bf16.msra.mxu0 0
      %2281 = vmatprep.subr.bf16.mxu0 0
      %2282 = vmatpush1.bf16.msra.mxu0 0
      %2283 = vmatprep.subr.bf16.mxu0 0
      %2284 = vmatpush1.bf16.msra.mxu0 0
      %2285 = vmatprep.subr.bf16.mxu0 0
      %2286 = vmatpush1.bf16.msra.mxu0 0
      %2287 = vmatprep.subr.bf16.mxu0 0
      %2288 = vmatpush1.bf16.msra.mxu0 0
      %2289 = vmatprep.subr.bf16.mxu0 0
      %2290 = vmatpush1.bf16.msra.mxu0 0
      %2291 = vmatprep.subr.bf16.mxu0 0
      %2292 = vmatpush1.bf16.msra.mxu0 0
      %2293 = vmatprep.subr.bf16.mxu0 0
      %2294 = vmatpush1.bf16.msra.mxu0 0
      %2295 = vmatprep.subr.bf16.mxu0 0
      %2296 = vmatpush1.bf16.msra.mxu0 0
      %2297 = vmatprep.subr.bf16.mxu0 0
      %2298 = vmatpush1.bf16.msra.mxu0 0
      %2299 = vmatprep.subr.bf16.mxu0 0
      %2300 = vmatpush1.bf16.msra.mxu0 0
      %2301 = vmatprep.subr.bf16.mxu0 0
      %2302 = vmatpush1.bf16.msra.mxu0 0
      %2303 = vmatprep.subr.bf16.mxu0 0
      %2304 = vmatpush1.bf16.msra.mxu0 0
      %2305 = vmatprep.subr.bf16.mxu0 0
      %2306 = vmatpush1.bf16.msra.mxu0 0
      %2307 = vmatprep.mubr.bf16.mxu0 0
      %2308 = vmatmul.mubr.bf16.gmra.mrb[0].mxu0 %v2270
      %v2309 = vpop.f32.mrb[0].mxu0
      %v2310 = vadd.f32 0.0, %v2309
      %v2311 = vpop.f32.mrb[0].mxu0
      %v2312 = vadd.f32 0.0, %v2311
      %v2313 = vpop.f32.mrb[0].mxu0
      %v2314 = vadd.f32 0.0, %v2313
      %v2315 = vpop.f32.mrb[0].mxu0
      %v2316 = vadd.f32 0.0, %v2315
      %2317 = vmatprep.mubr.bf16.mxu0 0
      %2318 = vmatmul.mubr.bf16.gmra.mrb[0].mxu0 %v2273
      %v2319 = vpop.f32.mrb[0].mxu0
      %v2320 = vadd.f32 0.0, %v2319
      %v2321 = vpop.f32.mrb[0].mxu0
      %v2322 = vadd.f32 0.0, %v2321
      %v2323 = vpop.f32.mrb[0].mxu0
      %v2324 = vadd.f32 0.0, %v2323
      %v2325 = vpop.f32.mrb[0].mxu0
      %v2326 = vadd.f32 0.0, %v2325
      %2327 = vdwg.mxu0
      %v2332 = vunpack.c.l.b16 %v2242
      %v2333 = vunpack.c.l.b16 %v2243
      %v2334 = vunpack.c.l.b16 %v2244
      %v2335 = vunpack.c.l.b16 %v2245
      %v2336 = vpack.c.b16 %v2333, %v2332
      %v2337 = vpack.c.b16 %v2335, %v2334
      %v2339 = vsel %vm1211, %v2336, 0
      %v2342 = vsel %vm1211, %v2337, 0
      %2344 = vmatprep.subr.bf16.mxu0 %v2247
      %2345 = vmatpush1.bf16.msra.mxu0 %v2246
      %2346 = vmatprep.subr.bf16.mxu0 %v2249
      %2347 = vmatpush1.bf16.msra.mxu0 %v2248
      %2348 = vmatprep.subr.bf16.mxu0 0
      %2349 = vmatpush1.bf16.msra.mxu0 0
      %2350 = vmatprep.subr.bf16.mxu0 0
      %2351 = vmatpush1.bf16.msra.mxu0 0
      %2352 = vmatprep.subr.bf16.mxu0 0
      %2353 = vmatpush1.bf16.msra.mxu0 0
      %2354 = vmatprep.subr.bf16.mxu0 0
      %2355 = vmatpush1.bf16.msra.mxu0 0
      %2356 = vmatprep.subr.bf16.mxu0 0
      %2357 = vmatpush1.bf16.msra.mxu0 0
      %2358 = vmatprep.subr.bf16.mxu0 0
      %2359 = vmatpush1.bf16.msra.mxu0 0
      %2360 = vmatprep.subr.bf16.mxu0 0
      %2361 = vmatpush1.bf16.msra.mxu0 0
      %2362 = vmatprep.subr.bf16.mxu0 0
      %2363 = vmatpush1.bf16.msra.mxu0 0
      %2364 = vmatprep.subr.bf16.mxu0 0
      %2365 = vmatpush1.bf16.msra.mxu0 0
      %2366 = vmatprep.subr.bf16.mxu0 0
      %2367 = vmatpush1.bf16.msra.mxu0 0
      %2368 = vmatprep.subr.bf16.mxu0 0
      %2369 = vmatpush1.bf16.msra.mxu0 0
      %2370 = vmatprep.subr.bf16.mxu0 0
      %2371 = vmatpush1.bf16.msra.mxu0 0
      %2372 = vmatprep.subr.bf16.mxu0 0
      %2373 = vmatpush1.bf16.msra.mxu0 0
      %2374 = vmatprep.subr.bf16.mxu0 0
      %2375 = vmatpush1.bf16.msra.mxu0 0
      %2376 = vmatprep.mubr.bf16.mxu0 0
      %2377 = vmatmul.mubr.bf16.gmra.mrb[0].mxu0 %v2339
      %v2378 = vpop.f32.mrb[0].mxu0
      %v2379 = vadd.f32 %v2310, %v2378
      %v2380 = vpop.f32.mrb[0].mxu0
      %v2381 = vadd.f32 %v2312, %v2380
      %v2382 = vpop.f32.mrb[0].mxu0
      %v2383 = vadd.f32 %v2314, %v2382
      %v2384 = vpop.f32.mrb[0].mxu0
      %v2385 = vadd.f32 %v2316, %v2384
      %2386 = vmatprep.mubr.bf16.mxu0 0
      %2387 = vmatmul.mubr.bf16.gmra.mrb[0].mxu0 %v2342
      %v2388 = vpop.f32.mrb[0].mxu0
      %v2389 = vadd.f32 %v2320, %v2388
      %v2390 = vpop.f32.mrb[0].mxu0
      %v2391 = vadd.f32 %v2322, %v2390
      %v2392 = vpop.f32.mrb[0].mxu0
      %v2393 = vadd.f32 %v2324, %v2392
      %v2394 = vpop.f32.mrb[0].mxu0
      %v2395 = vadd.f32 %v2326, %v2394
      %2396 = vdwg.mxu0
      %s2397 = scalar_lea.vmem %s18, 32
      %v2398 = vld [vmem:[%s2397] sm:$0xf]
      %v2399 = vld [vmem:[%s2397 + $0x4] sm:$0xf]
      %v2400 = vld [vmem:[%s2397 + $0x8] sm:$0xf]
      %v2401 = vld [vmem:[%s2397 + $0xc] sm:$0xf]
      %v2402 = vpack.c.bf16 %v2236, %v2234
      %v2403 = vpack.c.bf16 %v2237, %v2235
      %v2404 = vpack.c.bf16 %v2240, %v2238
      %v2405 = vpack.c.bf16 %v2241, %v2239
      %v2410 = vunpack.c.l.b16 %v2398
      %v2411 = vunpack.c.l.b16 %v2399
      %v2412 = vunpack.c.l.b16 %v2400
      %v2413 = vunpack.c.l.b16 %v2401
      %v2414 = vpack.c.b16 %v2411, %v2410
      %v2415 = vpack.c.b16 %v2413, %v2412
      %v2417 = vsel %vm1211, %v2414, 0
      %v2420 = vsel %vm1211, %v2415, 0
      %2422 = vmatprep.subr.bf16.mxu0 %v2403
      %2423 = vmatpush1.bf16.msra.mxu0 %v2402
      %2424 = vmatprep.subr.bf16.mxu0 %v2405
      %2425 = vmatpush1.bf16.msra.mxu0 %v2404
      %2426 = vmatprep.subr.bf16.mxu0 0
      %2427 = vmatpush1.bf16.msra.mxu0 0
      %2428 = vmatprep.subr.bf16.mxu0 0
      %2429 = vmatpush1.bf16.msra.mxu0 0
      %2430 = vmatprep.subr.bf16.mxu0 0
      %2431 = vmatpush1.bf16.msra.mxu0 0
      %2432 = vmatprep.subr.bf16.mxu0 0
      %2433 = vmatpush1.bf16.msra.mxu0 0
      %2434 = vmatprep.subr.bf16.mxu0 0
      %2435 = vmatpush1.bf16.msra.mxu0 0
      %2436 = vmatprep.subr.bf16.mxu0 0
      %2437 = vmatpush1.bf16.msra.mxu0 0
      %2438 = vmatprep.subr.bf16.mxu0 0
      %2439 = vmatpush1.bf16.msra.mxu0 0
      %2440 = vmatprep.subr.bf16.mxu0 0
      %2441 = vmatpush1.bf16.msra.mxu0 0
      %2442 = vmatprep.subr.bf16.mxu0 0
      %2443 = vmatpush1.bf16.msra.mxu0 0
      %2444 = vmatprep.subr.bf16.mxu0 0
      %2445 = vmatpush1.bf16.msra.mxu0 0
      %2446 = vmatprep.subr.bf16.mxu0 0
      %2447 = vmatpush1.bf16.msra.mxu0 0
      %2448 = vmatprep.subr.bf16.mxu0 0
      %2449 = vmatpush1.bf16.msra.mxu0 0
      %2450 = vmatprep.subr.bf16.mxu0 0
      %2451 = vmatpush1.bf16.msra.mxu0 0
      %2452 = vmatprep.subr.bf16.mxu0 0
      %2453 = vmatpush1.bf16.msra.mxu0 0
      %2454 = vmatprep.mubr.bf16.mxu0 0
      %2455 = vmatmul.mubr.bf16.gmra.mrb[0].mxu0 %v2417
      %v2456 = vpop.f32.mrb[0].mxu0
      %v2457 = vadd.f32 0.0, %v2456
      %v2458 = vpop.f32.mrb[0].mxu0
      %v2459 = vadd.f32 0.0, %v2458
      %v2460 = vpop.f32.mrb[0].mxu0
      %v2461 = vadd.f32 0.0, %v2460
      %v2462 = vpop.f32.mrb[0].mxu0
      %v2463 = vadd.f32 0.0, %v2462
      %2464 = vmatprep.mubr.bf16.mxu0 0
      %2465 = vmatmul.mubr.bf16.gmra.mrb[0].mxu0 %v2420
      %v2466 = vpop.f32.mrb[0].mxu0
      %v2467 = vadd.f32 0.0, %v2466
      %v2468 = vpop.f32.mrb[0].mxu0
      %v2469 = vadd.f32 0.0, %v2468
      %v2470 = vpop.f32.mrb[0].mxu0
      %v2471 = vadd.f32 0.0, %v2470
      %v2472 = vpop.f32.mrb[0].mxu0
      %v2473 = vadd.f32 0.0, %v2472
      %2474 = vdwg.mxu0
      %v2475 = vadd.f32 %v2379, %v2457
      %v2476 = vadd.f32 %v2381, %v2459
      %v2477 = vadd.f32 %v2383, %v2461
      %v2478 = vadd.f32 %v2385, %v2463
      %v2479 = vadd.f32 %v2389, %v2467
      %v2480 = vadd.f32 %v2391, %v2469
      %v2481 = vadd.f32 %v2393, %v2471
      %v2482 = vadd.f32 %v2395, %v2473
      %v2483 = vld [vmem:[%s19] sm:$0xff]
      %v2484 = vld [vmem:[%s19 + $0x8] sm:$0xff]
      %v2485 = vld [vmem:[%s19 + $0x10] sm:$0xff]
      %v2486 = vld [vmem:[%s19 + $0x18] sm:$0xff]
      %2488 = vset.pattern.permute.xlu0 0
      %2489 = vperm.xlu0 %2488, %v2483
      %v2490 = vpop.permute.xlu0 %2489
      %2493 = vset.pattern.permute.xlu0 0
      %2494 = vperm.xlu0 %2493, %v2484
      %v2495 = vpop.permute.xlu0 %2494
      %2498 = vset.pattern.permute.xlu0 0
      %2499 = vperm.xlu0 %2498, %v2485
      %v2500 = vpop.permute.xlu0 %2499
      %2503 = vset.pattern.permute.xlu0 0
      %2504 = vperm.xlu0 %2503, %v2486
      %v2505 = vpop.permute.xlu0 %2504
      %v2507 = vadd.f32 %v2475, %v2490
      %v2508 = vadd.f32 %v2476, %v2490
      %v2509 = vadd.f32 %v2477, %v2495
      %v2510 = vadd.f32 %v2478, %v2495
      %v2511 = vadd.f32 %v2479, %v2500
      %v2512 = vadd.f32 %v2480, %v2500
      %v2513 = vadd.f32 %v2481, %v2505
      %v2514 = vadd.f32 %v2482, %v2505
      %v2515 = vmax.f32 %v2507, 0.0
      %v2516 = vmax.f32 %v2508, 0.0
      %v2517 = vmax.f32 %v2509, 0.0
      %v2518 = vmax.f32 %v2510, 0.0
      %v2519 = vmax.f32 %v2511, 0.0
      %v2520 = vmax.f32 %v2512, 0.0
      %v2521 = vmax.f32 %v2513, 0.0
      %v2522 = vmax.f32 %v2514, 0.0
      %v2523 = vld [vmem:[%s20] sm:$0x1]
      %v2524 = vpack.c.bf16 %v2517, %v2515
      %v2525 = vpack.c.bf16 %v2518, %v2516
      %v2526 = vpack.c.bf16 %v2521, %v2519
      %v2527 = vpack.c.bf16 %v2522, %v2520
      %v2528 = vld [vmem:[%s21] sm:$0x3]
      %2530 = vset.pattern.permute.xlu0 0
      %2531 = vperm.xlu0 %2530, %v2528
      %v2532 = vpop.permute.xlu0 %2531
      %v2535 = vsel %vm1211, %v2523, 0
      %2537 = vmatprep.subr.bf16.mxu0 %v2525
      %2538 = vmatpush1.bf16.msra.mxu0 %v2524
      %2539 = vmatprep.subr.bf16.mxu0 %v2527
      %2540 = vmatpush1.bf16.msra.mxu0 %v2526
      %2541 = vmatprep.subr.bf16.mxu0 0
      %2542 = vmatpush1.bf16.msra.mxu0 0
      %2543 = vmatprep.subr.bf16.mxu0 0
      %2544 = vmatpush1.bf16.msra.mxu0 0
      %2545 = vmatprep.subr.bf16.mxu0 0
      %2546 = vmatpush1.bf16.msra.mxu0 0
      %2547 = vmatprep.subr.bf16.mxu0 0
      %2548 = vmatpush1.bf16.msra.mxu0 0
      %2549 = vmatprep.subr.bf16.mxu0 0
      %2550 = vmatpush1.bf16.msra.mxu0 0
      %2551 = vmatprep.subr.bf16.mxu0 0
      %2552 = vmatpush1.bf16.msra.mxu0 0
      %2553 = vmatprep.subr.bf16.mxu0 0
      %2554 = vmatpush1.bf16.msra.mxu0 0
      %2555 = vmatprep.subr.bf16.mxu0 0
      %2556 = vmatpush1.bf16.msra.mxu0 0
      %2557 = vmatprep.subr.bf16.mxu0 0
      %2558 = vmatpush1.bf16.msra.mxu0 0
      %2559 = vmatprep.subr.bf16.mxu0 0
      %2560 = vmatpush1.bf16.msra.mxu0 0
      %2561 = vmatprep.subr.bf16.mxu0 0
      %2562 = vmatpush1.bf16.msra.mxu0 0
      %2563 = vmatprep.subr.bf16.mxu0 0
      %2564 = vmatpush1.bf16.msra.mxu0 0
      %2565 = vmatprep.subr.bf16.mxu0 0
      %2566 = vmatpush1.bf16.msra.mxu0 0
      %2567 = vmatprep.subr.bf16.mxu0 0
      %2568 = vmatpush1.bf16.msra.mxu0 0
      %2569 = vmatprep.mubr.bf16.mxu0 0
      %2570 = vmatmul.mubr.bf16.gmra.mrb[0].mxu0 %v2535
      %v2571 = vpop.f32.mrb[0].mxu0
      %v2572 = vadd.f32 %v2532, %v2571
      %v2573 = vpop.f32.mrb[0].mxu0
      %v2574 = vadd.f32 %v2532, %v2573
      %v2575 = vpop.f32.mrb[0].mxu0
      %v2576 = vpop.f32.mrb[0].mxu0
      %2577 = vdwg.mxu0
      %v2580 = vcombine.low %v2572, %v2574
      %v2582 = vunpack.c.l.s4 1983009808
      %v2583 = vunpack.c.0.s8 %v2582
      %v2584 = vlaneseq
      %v2585 = vshrl.u32 %v2584, 7
      %v2586 = vsub.s32 %v2583, %v2585
      %v2587 = vrot.slane %v2580, %v2586
      %2589 = vst [vmem:[%s729] sm:$0xf] %v2587
      %s2590 = smul.u32 2, %s33
      %p2591 = scmp.lt.s32.totalorder %s2590, 3
      %s2592 = scalar_select %p2591, %s2590, 3
      %s2593 = smul.addr %s2592, 2
      %s2594 = scalar_lea.vmem %s22, %s2593
      // Predicated region
      $region109: #{stdf_forward.1} parent=107 // pred_check
        %p2595 = pneg %p528
      $region110: #{stdf_forward.1} parent=107 // pred_check_branch
        %2597 = sbr.rel (%p2595) target = $region112
      $region111: #{stdf_forward.1} parent=107 // pred_region
        %s2598 = smul.u32 2, %s33
      $region112: #{stdf_forward.1} parent=107 // pred_fallthru
        _
    $region108: #{stdf_forward.1} parent=5 // pred_fallthru
      _
    %p2599 = scmp.le.s32.totalorder 2, %s28
    // Predicated region
    $region113: #{stdf_forward.1} parent=5 // pred_check
      %p2600 = pneg %p2599
    $region114: #{stdf_forward.1} parent=5 // pred_check_branch
      %2602 = sbr.rel (%p2600) target = $region116
    $region115: #{stdf_forward.1} parent=5 // pred_region
      %s2603 = ssub.s32 %s28, 2
      // Predicated region
      $region117: #{stdf_forward.1} parent=115 // pred_check
        %p2604 = pneg %p534
      $region118: #{stdf_forward.1} parent=115 // pred_check_branch
        %2606 = sbr.rel (%p2604) target = $region120
      $region119: #{stdf_forward.1} parent=115 // pred_region
        %s2607 = smul.u32 2, %s34
        %p2608 = scmp.lt.s32.totalorder %s2607, 3
        %s2609 = scalar_select %p2608, %s2607, 3
        %s2610 = smul.addr %s2609, 2
        %s2611 = scalar_lea.vmem %s22, %s2610
      $region120: #{stdf_forward.1} parent=115 // pred_fallthru
        _
    $region116: #{stdf_forward.1} parent=5 // pred_fallthru
      _
  $region6: #{stdf_forward.1} parent=0 // loop_footer
    %s32 = sadd.s32 1, %s28
  $region7: #{stdf_forward.1} parent=0 // loop_footer_branch
    %27 = sbr.rel target = $region3
  $region8: #{stdf_forward.1} parent=0 // loop_exit
    _

</llo_original>
